<compile_context>
chip_gen: v7x
topology: tpu7x:2x2x1
jax: 0.10.0
libtpu: 0.0.40
codegen_flags: <defaults>
</compile_context>

<pallas_src>
import functools

import jax
import jax.numpy as jnp
import numpy as np
from jax import lax
from jax.experimental import pallas as pl
from jax.experimental.pallas import tpu as pltpu

# Geometry implied by the PyTorch module (MNIST-style 28x28, k3 s2 p1 twice).
_IN = 28            # input spatial
_H1 = 14            # conv1 output spatial
_H2 = 7             # conv2 output spatial
_NSP = _H2 * _H2    # 49 conv2 output positions
_K = 3
_KK = _K * _K       # 9
_KP = 128           # conv1 patch columns: 81 taps + 9 validity flags -> pad 128
_NCP = 128          # E*C2 (=96 at E=3) padded to 128 lanes
_NLP = 128          # E*L  (=24 at E=3) padded to 128 lanes
_LP = 128           # latent output padded to 128 lanes
_BT = 8             # batch tile (multiple of 8 sublanes); 49*8=392 rows/step


# ----------------------------------------------------------------------------
# Fused Pallas kernel (one batch tile per grid step)
# ----------------------------------------------------------------------------
def _fused_moe_kernel(p1_ref, w1_ref, w2_ref, b2_ref, w3_ref, b3_ref, g_ref,
                      o_ref, h2_ref):
    """Whole MoE forward for one batch tile.

    p1_ref : (NSP*BT, 128) bf16  conv1 patches; row = s*BT + b; cols = 81 taps
                                 (k2-major, k1-minor) + 9 validity flags + pad
    w1_ref : (128, 9*E*C1) bf16  conv1 weights, block-diag over the 9 conv2
                                 offsets; conv1 bias folded into the flag rows
    w2_ref : (9*E*C1, NCP) bf16  conv2 weights, block-diag over encoders
    b2_ref : (1, NCP)      f32
    w3_ref : (NSP, NCP, NLP) bf16  final linear per conv2 spatial position,
                                 block-diag over encoders
    b3_ref : (1, NLP)      f32
    g_ref  : (NLP, LP)     bf16  gate matrix: softmax(gating)[e]/E blocks
    o_ref  : (BT, LP)      f32   gated-mean output (lane padded)
    h2_ref : VMEM (NSP*BT, NCP) f32 scratch for conv2 activations
    """
    BT, _ = o_ref.shape
    NSP, _, NLP = w3_ref.shape

    # conv1 (+bias via validity column) + relu: one lane-dense matmul.
    h1 = jnp.dot(p1_ref[...], w1_ref[...], preferred_element_type=jnp.float32)
    h1 = jnp.maximum(h1, 0.0).astype(jnp.bfloat16)          # (NSP*BT, 9*E*C1)

    # conv2 + bias + relu: one matmul (padding taps contribute exact zeros).
    h2 = jnp.dot(h1, w2_ref[...], preferred_element_type=jnp.float32)
    h2_ref[...] = jnp.maximum(h2 + b2_ref[...], 0.0)         # (NSP*BT, NCP)

    # flatten + final linear fused: accumulate over conv2 spatial positions.
    def body(s, acc):
        r0 = pl.multiple_of(s * BT, BT)
        hs = h2_ref[pl.ds(r0, BT), :].astype(jnp.bfloat16)    # (BT, NCP)
        return acc + jnp.dot(hs, w3_ref[s], preferred_element_type=jnp.float32)

    acc3 = lax.fori_loop(0, NSP, body, jnp.zeros((BT, NLP), jnp.float32))
    z = jnp.maximum(acc3 + b3_ref[...], 0.0).astype(jnp.bfloat16)

    # gated mean over encoders as one small lane-dense matmul.
    o_ref[...] = jnp.dot(z, g_ref[...], preferred_element_type=jnp.float32)


# ----------------------------------------------------------------------------
# One-time tables / weight folding (outside the per-call jit)
# ----------------------------------------------------------------------------
@functools.lru_cache(maxsize=None)
def _patch_tables():
    """Gather indices (49,9,9) into the padded image + validity (49,9) mask,
    grouped by conv2 output position s and conv2 kernel offset k2."""
    wp = _IN + 2
    gidx = np.zeros((_NSP, _KK, _KK), np.int32)
    valid = np.zeros((_NSP, _KK), np.float32)
    for s in range(_NSP):
        oh2, ow2 = divmod(s, _H2)
        for k2 in range(_KK):
            kh2, kw2 = divmod(k2, _K)
            ph, pw = 2 * oh2 + kh2, 2 * ow2 + kw2     # conv2-padded h1 coords
            if ph == 0 or pw == 0:                    # conv2 zero padding
                continue
            valid[s, k2] = 1.0
            oh1, ow1 = ph - 1, pw - 1                 # conv1 output coords
            for k1 in range(_KK):
                kh1, kw1 = divmod(k1, _K)
                gidx[s, k2, k1] = (2 * oh1 + kh1) * wp + (2 * ow1 + kw1)
    return gidx, valid


def fold_params(params):
    """One-time folding of the per-encoder weights into lane-dense,
    block-diagonal layouts (precomputed once per weight set, not per call).
    TODO(synk): block-diag w2f/w3f carry O(E^2) zeros; for large E move the
    encoder axis to a grid dimension instead of the matmul N dimension."""
    W1, b1, W2, b2, W3, b3 = [np.asarray(p, np.float32) for p in params]
    E, C1 = W1.shape[0], W1.shape[1]
    C2, L = W2.shape[1], W3.shape[1]
    EC1 = E * C1

    # conv1: rows 0..80 = taps (k2-major, k1-minor); rows 81..89 = bias flags.
    w1f = np.zeros((_KP, _KK * EC1), np.float32)
    w1_k = W1.reshape(EC1, _KK).T            # (k1, e*C1 + c1)
    b1_f = b1.reshape(EC1)
    for k2 in range(_KK):
        w1f[9 * k2:9 * k2 + 9, k2 * EC1:(k2 + 1) * EC1] = w1_k
        w1f[81 + k2, k2 * EC1:(k2 + 1) * EC1] = b1_f

    # conv2: (9*E*C1, NCP), block-diagonal over encoders.
    W2r = W2.reshape(E, C2, C1, _KK)
    w2f = np.zeros((_KK * EC1, _NCP), np.float32)
    for k2 in range(_KK):
        for e in range(E):
            w2f[k2 * EC1 + e * C1:k2 * EC1 + (e + 1) * C1,
                e * C2:(e + 1) * C2] = W2r[e, :, :, k2].T
    b2f = np.zeros((1, _NCP), np.float32)
    b2f[0, :E * C2] = b2.reshape(-1)

    # final linear: (NSP, NCP, NLP); W3 in-feature index is c2*49 + s (NCHW).
    W3r = W3.reshape(E, L, C2, _NSP)
    w3f = np.zeros((_NSP, _NCP, _NLP), np.float32)
    for e in range(E):
        w3f[:, e * C2:(e + 1) * C2, e * L:(e + 1) * L] = W3r[e].transpose(2, 1, 0)
    b3f = np.zeros((1, _NLP), np.float32)
    b3f[0, :E * L] = b3.reshape(-1)

    # gate scatter pattern: 1 at (e*L + l, l).
    gpat = np.zeros((_NLP, _LP), np.float32)
    for e in range(E):
        gpat[e * L + np.arange(L), np.arange(L)] = 1.0

    return dict(
        E=E, L=L,
        w1f=jnp.asarray(w1f, jnp.bfloat16),
        w2f=jnp.asarray(w2f, jnp.bfloat16),
        b2f=jnp.asarray(b2f, jnp.float32),
        w3f=jnp.asarray(w3f, jnp.bfloat16),
        b3f=jnp.asarray(b3f, jnp.float32),
        gpat=jnp.asarray(gpat, jnp.float32),
    )


# ----------------------------------------------------------------------------
# Forward pass
# ----------------------------------------------------------------------------
@functools.partial(jax.jit, static_argnames=("E", "L"))
def _moe_forward(x, gating, w1f, w2f, b2f, w3f, b3f, gpat, *, E, L):
    B = x.shape[0]
    n_bt = -(-B // _BT)
    BP = n_bt * _BT
    wp = _IN + 2
    rows = _NSP * _BT

    gidx, valid = _patch_tables()
    mask81 = np.repeat(valid, _KK, axis=1)                    # (49, 81)

    gate = jax.nn.softmax(gating)                             # F.softmax

    # conv1 patch matrix: (n_bt, NSP*BT, 128), row within a tile = s*BT + b.
    xpad = jnp.pad(x.reshape(B, _IN, _IN), ((0, 0), (1, 1), (1, 1)))
    taps = xpad.reshape(B, wp * wp)[:, gidx.reshape(-1)]
    taps = taps.reshape(B, _NSP, _KK * _KK) * jnp.asarray(mask81)[None]
    flags = jnp.broadcast_to(jnp.asarray(valid)[None], (B, _NSP, _KK))
    p1 = jnp.concatenate([taps, flags], axis=-1)              # (B, 49, 90)
    p1 = jnp.pad(p1, ((0, BP - B), (0, 0), (0, _KP - p1.shape[-1])))
    p1 = (p1.reshape(n_bt, _BT, _NSP, _KP)
            .transpose(0, 2, 1, 3)
            .reshape(n_bt, rows, _KP)
            .astype(jnp.bfloat16))

    # gate matrix: out[b, l] = sum_e softmax(gating)[e]/E * z[b, e*L + l].
    gvec = jnp.pad(jnp.repeat(gate, L), (0, _NLP - E * L)) * (1.0 / E)
    gmat = (gpat * gvec[:, None]).astype(jnp.bfloat16)

    out = pl.pallas_call(
        _fused_moe_kernel,
        out_shape=jax.ShapeDtypeStruct((n_bt, _BT, _LP), jnp.float32),
        grid=(n_bt,),
        in_specs=[
            pl.BlockSpec((None, rows, _KP), lambda i: (i, 0, 0)),   # p1 tile
            pl.BlockSpec(w1f.shape, lambda i: (0, 0)),              # resident
            pl.BlockSpec(w2f.shape, lambda i: (0, 0)),
            pl.BlockSpec(b2f.shape, lambda i: (0, 0)),
            pl.BlockSpec(w3f.shape, lambda i: (0, 0, 0)),
            pl.BlockSpec(b3f.shape, lambda i: (0, 0)),
            pl.BlockSpec(gmat.shape, lambda i: (0, 0)),
        ],
        out_specs=pl.BlockSpec((None, _BT, _LP), lambda i: (i, 0, 0)),
        scratch_shapes=[pltpu.VMEM((rows, _NCP), jnp.float32)],
        compiler_params=pltpu.CompilerParams(
            dimension_semantics=("parallel",),
            vmem_limit_bytes=32 * 1024 * 1024),
    )(p1, w1f, w2f, b2f, w3f, b3f, gmat)

    return out.reshape(BP, _LP)[:B, :L]


def moe_forward(x, gating, folded):
    return _moe_forward(x, gating, folded["w1f"], folded["w2f"], folded["b2f"],
                        folded["w3f"], folded["b3f"], folded["gpat"],
                        E=folded["E"], L=folded["L"])


# ----------------------------------------------------------------------------
# Parameter init + pure-JAX reference (correctness check)
# ----------------------------------------------------------------------------
def init_params(key, latent_dim, num_encoders):
    ks = jax.random.split(key, 6)
    s = 0.1
    W1 = s * jax.random.normal(ks[0], (num_encoders, 16, 1, 3, 3), jnp.float32)
    b1 = s * jax.random.normal(ks[1], (num_encoders, 16), jnp.float32)
    W2 = s * jax.random.normal(ks[2], (num_encoders, 32, 16, 3, 3), jnp.float32)
    b2 = s * jax.random.normal(ks[3], (num_encoders, 32), jnp.float32)
    W3 = s * jax.random.normal(ks[4], (num_encoders, latent_dim, 32 * 7 * 7),
                               jnp.float32)
    b3 = s * jax.random.normal(ks[5], (num_encoders, latent_dim), jnp.float32)
    return W1, b1, W2, b2, W3, b3


def _encoder_ref(x, W1, b1, W2, b2, W3, b3):
    dn = ("NCHW", "OIHW", "NCHW")
    hp = jax.lax.Precision.HIGHEST
    h = jax.lax.conv_general_dilated(x, W1, (2, 2), ((1, 1), (1, 1)),
                                     dimension_numbers=dn, precision=hp)
    h = jax.nn.relu(h + b1[None, :, None, None])
    h = jax.lax.conv_general_dilated(h, W2, (2, 2), ((1, 1), (1, 1)),
                                     dimension_numbers=dn, precision=hp)
    h = jax.nn.relu(h + b2[None, :, None, None])
    h = h.reshape(h.shape[0], -1)
    return jax.nn.relu(jnp.dot(h, W3.T, precision=hp) + b3)


def moe_ref(x, gating, params):
    W1, b1, W2, b2, W3, b3 = params
    gate = jax.nn.softmax(gating)
    outs = jnp.stack([_encoder_ref(x, W1[e], b1[e], W2[e], b2[e], W3[e], b3[e])
                      for e in range(W1.shape[0])])
    return (outs * gate.reshape(-1, 1, 1)).mean(axis=0)


# ----------------------------------------------------------------------------
if __name__ == "__main__":
    latent_dimension = 8
    num_encoders = 3
    batch = 2

    key = jax.random.PRNGKey(0)
    k_x, k_g, k_p = jax.random.split(key, 3)
    x = jax.random.normal(k_x, (batch, 1, 28, 28), jnp.float32)  # MNIST-shaped
    gating = jax.random.normal(k_g, (num_encoders,), jnp.float32)
    params = init_params(k_p, latent_dimension, num_encoders)

    folded = fold_params(params)          # once, outside the per-call jit
    out = jax.block_until_ready(moe_forward(x, gating, folded))

    ref = moe_ref(x, gating, params)
    # bf16 MXU inputs with f32 accumulation -> loosened tolerance (perf review)
    np.testing.assert_allclose(np.asarray(out), np.asarray(ref),
                               rtol=2e-2, atol=2e-2)

    print("KERNEL_OK")
</pallas_src>

<mosaic_0001>
module attributes {stable_mosaic.version = 11 : i64} {
  func.func @_fused_moe_kernel(%arg0: i32, %arg1: memref<1x392x128xbf16, #tpu.memory_space<vmem>>, %arg2: memref<128x432xbf16, #tpu.memory_space<vmem>>, %arg3: memref<432x128xbf16, #tpu.memory_space<vmem>>, %arg4: memref<1x128xf32, #tpu.memory_space<vmem>>, %arg5: memref<49x128x128xbf16, #tpu.memory_space<vmem>>, %arg6: memref<1x128xf32, #tpu.memory_space<vmem>>, %arg7: memref<128x128xbf16, #tpu.memory_space<vmem>>, %arg8: memref<1x8x128xf32, #tpu.memory_space<vmem>>, %arg9: memref<392x128xf32, #tpu.memory_space<vmem>>) attributes {dimension_semantics = [#tpu.dimension_semantics<parallel>], iteration_bounds = array<i64: 1>, scalar_prefetch = 0 : i64, scratch_operands = 1 : i64, tpu.core_type = #tpu.core_type<tc>, window_params = [{transform_indices = @transform_0, window_bounds = array<i64: 1, 392, 128>}, {pipeline_mode = #tpu.pipeline_mode<synchronous>, transform_indices = @transform_1, window_bounds = array<i64: 128, 432>}, {pipeline_mode = #tpu.pipeline_mode<synchronous>, transform_indices = @transform_2, window_bounds = array<i64: 432, 128>}, {pipeline_mode = #tpu.pipeline_mode<synchronous>, transform_indices = @transform_3, window_bounds = array<i64: 1, 128>}, {pipeline_mode = #tpu.pipeline_mode<synchronous>, transform_indices = @transform_4, window_bounds = array<i64: 49, 128, 128>}, {pipeline_mode = #tpu.pipeline_mode<synchronous>, transform_indices = @transform_5, window_bounds = array<i64: 1, 128>}, {pipeline_mode = #tpu.pipeline_mode<synchronous>, transform_indices = @transform_6, window_bounds = array<i64: 128, 128>}, {transform_indices = @transform_7, window_bounds = array<i64: 1, 8, 128>}]} {
    %c0 = arith.constant 0 : index
    %c0_0 = arith.constant 0 : index
    %c0_1 = arith.constant 0 : index
    %0 = vector.load %arg1[%c0, %c0_0, %c0_1] : memref<1x392x128xbf16, #tpu.memory_space<vmem>>, vector<1x392x128xbf16>
    %1 = vector.shape_cast %0 : vector<1x392x128xbf16> to vector<392x128xbf16>
    %c0_2 = arith.constant 0 : index
    %c0_3 = arith.constant 0 : index
    %2 = vector.load %arg2[%c0_2, %c0_3] : memref<128x432xbf16, #tpu.memory_space<vmem>>, vector<128x432xbf16>
    %cst = arith.constant dense<0.000000e+00> : vector<392x432xf32>
    %3 = tpu.matmul %1, %2, %cst {dimension_numbers = #tpu.dot_dimension_numbers<[1], [0], [0], [1], [0, 0, 1, 1], [], []>} : vector<392x128xbf16>, vector<128x432xbf16>, vector<392x432xf32> -> vector<392x432xf32>
    %cst_4 = arith.constant 0.000000e+00 : f32
    %4 = vector.broadcast %cst_4 : f32 to vector<392x432xf32>
    %5 = arith.maximumf %3, %4 : vector<392x432xf32>
    %6 = arith.truncf %5 : vector<392x432xf32> to vector<392x432xbf16>
    %c0_5 = arith.constant 0 : index
    %c0_6 = arith.constant 0 : index
    %7 = vector.load %arg3[%c0_5, %c0_6] : memref<432x128xbf16, #tpu.memory_space<vmem>>, vector<432x128xbf16>
    %cst_7 = arith.constant dense<0.000000e+00> : vector<392x128xf32>
    %8 = tpu.matmul %6, %7, %cst_7 {dimension_numbers = #tpu.dot_dimension_numbers<[1], [0], [0], [1], [0, 0, 1, 1], [], []>} : vector<392x432xbf16>, vector<432x128xbf16>, vector<392x128xf32> -> vector<392x128xf32>
    %c0_8 = arith.constant 0 : index
    %c0_9 = arith.constant 0 : index
    %9 = vector.load %arg4[%c0_8, %c0_9] : memref<1x128xf32, #tpu.memory_space<vmem>>, vector<1x128xf32>
    %10 = vector.broadcast %9 : vector<1x128xf32> to vector<392x128xf32>
    %11 = arith.addf %8, %10 : vector<392x128xf32>
    %cst_10 = arith.constant 0.000000e+00 : f32
    %12 = vector.broadcast %cst_10 : f32 to vector<392x128xf32>
    %13 = arith.maximumf %11, %12 : vector<392x128xf32>
    %c0_11 = arith.constant 0 : index
    %c0_12 = arith.constant 0 : index
    %14 = vector.load %arg9[%c0_11, %c0_12] : memref<392x128xf32, #tpu.memory_space<vmem>>, vector<392x128xf32>
    tpu.vector_store %arg9[%c0_11, %c0_12], %13 {strides = array<i32>} : memref<392x128xf32, #tpu.memory_space<vmem>>, vector<392x128xf32>,
    %cst_13 = arith.constant 0.000000e+00 : f32
    %15 = vector.broadcast %cst_13 : f32 to vector<8x128xf32>
    %c0_i32 = arith.constant 0 : i32
    %c49_i32 = arith.constant 49 : i32
    %16 = arith.addi %c0_i32, %c49_i32 : i32
    %c1_i32 = arith.constant 1 : i32
    %17 = scf.for %arg10 = %c0_i32 to %16 step %c1_i32 iter_args(%arg11 = %15) -> (vector<8x128xf32>)  : i32 {
      %c8_i32 = arith.constant 8 : i32
      %29 = arith.muli %arg10, %c8_i32 : i32
      %30 = tpu.assume_multiple %29, 8 : i32
      %31 = arith.index_cast %30 : i32 to index
      %c0_24 = arith.constant 0 : index
      %32 = vector.load %arg9[%31, %c0_24] : memref<392x128xf32, #tpu.memory_space<vmem>>, vector<8x128xf32>
      %33 = arith.truncf %32 : vector<8x128xf32> to vector<8x128xbf16>
      %34 = arith.index_cast %arg10 : i32 to index
      %c0_25 = arith.constant 0 : index
      %c0_26 = arith.constant 0 : index
      %35 = vector.load %arg5[%34, %c0_25, %c0_26] : memref<49x128x128xbf16, #tpu.memory_space<vmem>>, vector<1x128x128xbf16>
      %36 = vector.shape_cast %35 : vector<1x128x128xbf16> to vector<128x128xbf16>
      %cst_27 = arith.constant dense<0.000000e+00> : vector<8x128xf32>
      %37 = tpu.matmul %33, %36, %cst_27 {dimension_numbers = #tpu.dot_dimension_numbers<[1], [0], [0], [1], [0, 0, 1, 1], [], []>} : vector<8x128xbf16>, vector<128x128xbf16>, vector<8x128xf32> -> vector<8x128xf32>
      %38 = arith.addf %arg11, %37 : vector<8x128xf32>
      scf.yield %38 : vector<8x128xf32>
    }
    %c49_i32_14 = arith.constant 49 : i32
    %c0_15 = arith.constant 0 : index
    %c0_16 = arith.constant 0 : index
    %18 = vector.load %arg6[%c0_15, %c0_16] : memref<1x128xf32, #tpu.memory_space<vmem>>, vector<1x128xf32>
    %19 = vector.broadcast %18 : vector<1x128xf32> to vector<8x128xf32>
    %20 = arith.addf %17, %19 : vector<8x128xf32>
    %cst_17 = arith.constant 0.000000e+00 : f32
    %21 = vector.broadcast %cst_17 : f32 to vector<8x128xf32>
    %22 = arith.maximumf %20, %21 : vector<8x128xf32>
    %23 = arith.truncf %22 : vector<8x128xf32> to vector<8x128xbf16>
    %c0_18 = arith.constant 0 : index
    %c0_19 = arith.constant 0 : index
    %24 = vector.load %arg7[%c0_18, %c0_19] : memref<128x128xbf16, #tpu.memory_space<vmem>>, vector<128x128xbf16>
    %cst_20 = arith.constant dense<0.000000e+00> : vector<8x128xf32>
    %25 = tpu.matmul %23, %24, %cst_20 {dimension_numbers = #tpu.dot_dimension_numbers<[1], [0], [0], [1], [0, 0, 1, 1], [], []>} : vector<8x128xbf16>, vector<128x128xbf16>, vector<8x128xf32> -> vector<8x128xf32>
    %c0_21 = arith.constant 0 : index
    %c0_22 = arith.constant 0 : index
    %c0_23 = arith.constant 0 : index
    %26 = vector.load %arg8[%c0_21, %c0_22, %c0_23] : memref<1x8x128xf32, #tpu.memory_space<vmem>>, vector<1x8x128xf32>
    %27 = vector.shape_cast %26 : vector<1x8x128xf32> to vector<8x128xf32>
    %28 = vector.shape_cast %25 : vector<8x128xf32> to vector<1x8x128xf32>
    tpu.vector_store %arg8[%c0_21, %c0_22, %c0_23], %28 {strides = array<i32>} : memref<1x8x128xf32, #tpu.memory_space<vmem>>, vector<1x8x128xf32>,
    return
  }
  func.func @transform_0(%arg0: i32) -> (i32, i32, i32) {
    %c0_i32 = arith.constant 0 : i32
    %c0_i32_0 = arith.constant 0 : i32
    %c0_i32_1 = arith.constant 0 : i32
    return %arg0, %c0_i32, %c0_i32_0 : i32, i32, i32
  }
  func.func @transform_1(%arg0: i32) -> (i32, i32) {
    %c0_i32 = arith.constant 0 : i32
    %c0_i32_0 = arith.constant 0 : i32
    %c0_i32_1 = arith.constant 0 : i32
    return %c0_i32, %c0_i32_0 : i32, i32
  }
  func.func @transform_2(%arg0: i32) -> (i32, i32) {
    %c0_i32 = arith.constant 0 : i32
    %c0_i32_0 = arith.constant 0 : i32
    %c0_i32_1 = arith.constant 0 : i32
    return %c0_i32, %c0_i32_0 : i32, i32
  }
  func.func @transform_3(%arg0: i32) -> (i32, i32) {
    %c0_i32 = arith.constant 0 : i32
    %c0_i32_0 = arith.constant 0 : i32
    %c0_i32_1 = arith.constant 0 : i32
    return %c0_i32, %c0_i32_0 : i32, i32
  }
  func.func @transform_4(%arg0: i32) -> (i32, i32, i32) {
    %c0_i32 = arith.constant 0 : i32
    %c0_i32_0 = arith.constant 0 : i32
    %c0_i32_1 = arith.constant 0 : i32
    %c0_i32_2 = arith.constant 0 : i32
    return %c0_i32, %c0_i32_0, %c0_i32_1 : i32, i32, i32
  }
  func.func @transform_5(%arg0: i32) -> (i32, i32) {
    %c0_i32 = arith.constant 0 : i32
    %c0_i32_0 = arith.constant 0 : i32
    %c0_i32_1 = arith.constant 0 : i32
    return %c0_i32, %c0_i32_0 : i32, i32
  }
  func.func @transform_6(%arg0: i32) -> (i32, i32) {
    %c0_i32 = arith.constant 0 : i32
    %c0_i32_0 = arith.constant 0 : i32
    %c0_i32_1 = arith.constant 0 : i32
    return %c0_i32, %c0_i32_0 : i32, i32
  }
  func.func @transform_7(%arg0: i32) -> (i32, i32, i32) {
    %c0_i32 = arith.constant 0 : i32
    %c0_i32_0 = arith.constant 0 : i32
    %c0_i32_1 = arith.constant 0 : i32
    return %arg0, %c0_i32, %c0_i32_0 : i32, i32, i32
  }
}

</mosaic_0001>

<llo_original>
// kernel: _moe_forward.1
$region0: #{_moe_forward.1}
  #allocation0 [shape = 'u32[]', space=smem, size = 0x4, offset = 0x4, fixed_abs, tag = 'smem constant byte address 0x4 - core index']
  #allocation1 [shape = 'u32[144,128]{1,0:T(1,128)}', space=vmem, size = 0x12000, scoped, tag = 'internal scratch']
  #allocation2 [shape = 'f32[392,128]{1,0:T(8,128)}', space=vmem, size = 0x31000, scoped, tag = 'scratch operand']
  %s0 = inlined_call_operand.vmem [shape: bf16[1,392,128], index: 0, kind: input, shape index: {}]
  %s1 = inlined_call_operand.vmem [shape: bf16[128,432], index: 1, kind: input, shape index: {}]
  %s2 = inlined_call_operand.vmem [shape: bf16[432,128], index: 2, kind: input, shape index: {}]
  %s3 = inlined_call_operand.vmem [shape: f32[1,128], index: 3, kind: input, shape index: {}]
  %s4 = inlined_call_operand.vmem [shape: bf16[49,128,128], index: 4, kind: input, shape index: {}]
  %s5 = inlined_call_operand.vmem [shape: f32[1,128], index: 5, kind: input, shape index: {}]
  %s6 = inlined_call_operand.vmem [shape: bf16[128,128], index: 6, kind: input, shape index: {}]
  %s7 = inlined_call_operand.vmem [shape: f32[1,8,128], index: 7, kind: output, shape index: {}]
  %s8 = sld [smem:[#allocation0]]
  $region45: #{_moe_forward.1} parent=0
    _
  %s10 = ssub.s32 1, %s8
  %s11 = scalar_select 0, %s10, %s8
  // Predicated region
  $region2: #{_moe_forward.1} parent=0 // pred_check
    _
  $region3: #{_moe_forward.1} parent=0 // pred_check_branch
    %13 = sbr.rel (0) target = $region5
  $region4: #{_moe_forward.1} parent=0 // pred_region
    _
  $region5: #{_moe_forward.1} parent=0 // pred_fallthru
    _
  // Predicated region
  $region6: #{_moe_forward.1} parent=0 // pred_check
    _
  $region7: #{_moe_forward.1} parent=0 // pred_check_branch
    %15 = sbr.rel (0) target = $region9
  $region8: #{_moe_forward.1} parent=0 // pred_region
    _
  $region9: #{_moe_forward.1} parent=0 // pred_fallthru
    _
  // Predicated region
  $region10: #{_moe_forward.1} parent=0 // pred_check
    _
  $region11: #{_moe_forward.1} parent=0 // pred_check_branch
    %17 = sbr.rel (0) target = $region13
  $region12: #{_moe_forward.1} parent=0 // pred_region
    _
  $region13: #{_moe_forward.1} parent=0 // pred_fallthru
    _
  // Predicated region
  $region14: #{_moe_forward.1} parent=0 // pred_check
    _
  $region15: #{_moe_forward.1} parent=0 // pred_check_branch
    %19 = sbr.rel (0) target = $region17
  $region16: #{_moe_forward.1} parent=0 // pred_region
    _
  $region17: #{_moe_forward.1} parent=0 // pred_fallthru
    _
  // Predicated region
  $region18: #{_moe_forward.1} parent=0 // pred_check
    _
  $region19: #{_moe_forward.1} parent=0 // pred_check_branch
    %21 = sbr.rel (0) target = $region21
  $region20: #{_moe_forward.1} parent=0 // pred_region
    _
  $region21: #{_moe_forward.1} parent=0 // pred_fallthru
    _
  // Predicated region
  $region22: #{_moe_forward.1} parent=0 // pred_check
    _
  $region23: #{_moe_forward.1} parent=0 // pred_check_branch
    %23 = sbr.rel (0) target = $region25
  $region24: #{_moe_forward.1} parent=0 // pred_region
    _
  $region25: #{_moe_forward.1} parent=0 // pred_fallthru
    _
  // Predicated region
  $region26: #{_moe_forward.1} parent=0 // pred_check
    _
  $region27: #{_moe_forward.1} parent=0 // pred_check_branch
    %25 = sbr.rel (0) target = $region29
  $region28: #{_moe_forward.1} parent=0 // pred_region
    _
  $region29: #{_moe_forward.1} parent=0 // pred_fallthru
    _
  %v27 = vld [vmem:[%s0] sm:$0xf]
  %v28 = vld [vmem:[%s0 + $0x4] sm:$0xf]
  %v29 = vld [vmem:[%s0 + $0x8] sm:$0xf]
  %v30 = vld [vmem:[%s0 + $0xc] sm:$0xf]
  %v31 = vld [vmem:[%s0 + $0x10] sm:$0xf]
  %v32 = vld [vmem:[%s0 + $0x14] sm:$0xf]
  %v33 = vld [vmem:[%s0 + $0x18] sm:$0xf]
  %v34 = vld [vmem:[%s0 + $0x1c] sm:$0xf]
  %v35 = vld [vmem:[%s0 + $0x20] sm:$0xf]
  %v36 = vld [vmem:[%s0 + $0x24] sm:$0xf]
  %v37 = vld [vmem:[%s0 + $0x28] sm:$0xf]
  %v38 = vld [vmem:[%s0 + $0x2c] sm:$0xf]
  %v39 = vld [vmem:[%s0 + $0x30] sm:$0xf]
  %v40 = vld [vmem:[%s0 + $0x34] sm:$0xf]
  %v41 = vld [vmem:[%s0 + $0x38] sm:$0xf]
  %v42 = vld [vmem:[%s0 + $0x3c] sm:$0xf]
  %v43 = vld [vmem:[%s0 + $0x40] sm:$0xf]
  %v44 = vld [vmem:[%s0 + $0x44] sm:$0xf]
  %v45 = vld [vmem:[%s0 + $0x48] sm:$0xf]
  %v46 = vld [vmem:[%s0 + $0x4c] sm:$0xf]
  %v47 = vld [vmem:[%s0 + $0x50] sm:$0xf]
  %v48 = vld [vmem:[%s0 + $0x54] sm:$0xf]
  %v49 = vld [vmem:[%s0 + $0x58] sm:$0xf]
  %v50 = vld [vmem:[%s0 + $0x5c] sm:$0xf]
  %v51 = vld [vmem:[%s0 + $0x60] sm:$0xf]
  %v52 = vld [vmem:[%s0 + $0x64] sm:$0xf]
  %v53 = vld [vmem:[%s0 + $0x68] sm:$0xf]
  %v54 = vld [vmem:[%s0 + $0x6c] sm:$0xf]
  %v55 = vld [vmem:[%s0 + $0x70] sm:$0xf]
  %v56 = vld [vmem:[%s0 + $0x74] sm:$0xf]
  %v57 = vld [vmem:[%s0 + $0x78] sm:$0xf]
  %v58 = vld [vmem:[%s0 + $0x7c] sm:$0xf]
  %v59 = vld [vmem:[%s0 + $0x80] sm:$0xf]
  %v60 = vld [vmem:[%s0 + $0x84] sm:$0xf]
  %v61 = vld [vmem:[%s0 + $0x88] sm:$0xf]
  %v62 = vld [vmem:[%s0 + $0x8c] sm:$0xf]
  %v63 = vld [vmem:[%s0 + $0x90] sm:$0xf]
  %v64 = vld [vmem:[%s0 + $0x94] sm:$0xf]
  %v65 = vld [vmem:[%s0 + $0x98] sm:$0xf]
  %v66 = vld [vmem:[%s0 + $0x9c] sm:$0xf]
  %v67 = vld [vmem:[%s0 + $0xa0] sm:$0xf]
  %v68 = vld [vmem:[%s0 + $0xa4] sm:$0xf]
  %v69 = vld [vmem:[%s0 + $0xa8] sm:$0xf]
  %v70 = vld [vmem:[%s0 + $0xac] sm:$0xf]
  %v71 = vld [vmem:[%s0 + $0xb0] sm:$0xf]
  %v72 = vld [vmem:[%s0 + $0xb4] sm:$0xf]
  %v73 = vld [vmem:[%s0 + $0xb8] sm:$0xf]
  %v74 = vld [vmem:[%s0 + $0xbc] sm:$0xf]
  %v75 = vld [vmem:[%s0 + $0xc0] sm:$0xf]
  %v76 = vld [vmem:[%s1] sm:$0xff]
  %v77 = vld [vmem:[%s1 + $0x8] sm:$0xff]
  %v78 = vld [vmem:[%s1 + $0x10] sm:$0xff]
  %v79 = vld [vmem:[%s1 + $0x18] sm:$0xff]
  %v80 = vld [vmem:[%s1 + $0x20] sm:$0xff]
  %v81 = vld [vmem:[%s1 + $0x28] sm:$0xff]
  %v82 = vld [vmem:[%s1 + $0x30] sm:$0xff]
  %v83 = vld [vmem:[%s1 + $0x38] sm:$0xff]
  %v84 = vld [vmem:[%s1 + $0x40] sm:$0xff]
  %v85 = vld [vmem:[%s1 + $0x48] sm:$0xff]
  %v86 = vld [vmem:[%s1 + $0x50] sm:$0xff]
  %v87 = vld [vmem:[%s1 + $0x58] sm:$0xff]
  %v88 = vld [vmem:[%s1 + $0x60] sm:$0xff]
  %v89 = vld [vmem:[%s1 + $0x68] sm:$0xff]
  %v90 = vld [vmem:[%s1 + $0x70] sm:$0xff]
  %v91 = vld [vmem:[%s1 + $0x78] sm:$0xff]
  %v92 = vld [vmem:[%s1 + $0x80] sm:$0xff]
  %v93 = vld [vmem:[%s1 + $0x88] sm:$0xff]
  %v94 = vld [vmem:[%s1 + $0x90] sm:$0xff]
  %v95 = vld [vmem:[%s1 + $0x98] sm:$0xff]
  %v96 = vld [vmem:[%s1 + $0xa0] sm:$0xff]
  %v97 = vld [vmem:[%s1 + $0xa8] sm:$0xff]
  %v98 = vld [vmem:[%s1 + $0xb0] sm:$0xff]
  %v99 = vld [vmem:[%s1 + $0xb8] sm:$0xff]
  %v100 = vld [vmem:[%s1 + $0xc0] sm:$0xff]
  %v101 = vld [vmem:[%s1 + $0xc8] sm:$0xff]
  %v102 = vld [vmem:[%s1 + $0xd0] sm:$0xff]
  %v103 = vld [vmem:[%s1 + $0xd8] sm:$0xff]
  %v104 = vld [vmem:[%s1 + $0xe0] sm:$0xff]
  %v105 = vld [vmem:[%s1 + $0xe8] sm:$0xff]
  %v106 = vld [vmem:[%s1 + $0xf0] sm:$0xff]
  %v107 = vld [vmem:[%s1 + $0xf8] sm:$0xff]
  %v157 = vunpack.c.l.b16 %v27
  %v158 = vunpack.c.l.b16 %v28
  %v159 = vunpack.c.l.b16 %v29
  %v160 = vunpack.c.l.b16 %v30
  %v161 = vunpack.c.l.b16 %v31
  %v162 = vunpack.c.l.b16 %v32
  %v163 = vunpack.c.l.b16 %v33
  %v164 = vunpack.c.l.b16 %v34
  %v165 = vunpack.c.l.b16 %v35
  %v166 = vunpack.c.l.b16 %v36
  %v167 = vunpack.c.l.b16 %v37
  %v168 = vunpack.c.l.b16 %v38
  %v169 = vunpack.c.l.b16 %v39
  %v170 = vunpack.c.l.b16 %v40
  %v171 = vunpack.c.l.b16 %v41
  %v172 = vunpack.c.l.b16 %v42
  %v173 = vunpack.c.l.b16 %v43
  %v174 = vunpack.c.l.b16 %v44
  %v175 = vunpack.c.l.b16 %v45
  %v176 = vunpack.c.l.b16 %v46
  %v177 = vunpack.c.l.b16 %v47
  %v178 = vunpack.c.l.b16 %v48
  %v179 = vunpack.c.l.b16 %v49
  %v180 = vunpack.c.l.b16 %v50
  %v181 = vunpack.c.l.b16 %v51
  %v182 = vunpack.c.l.b16 %v52
  %v183 = vunpack.c.l.b16 %v53
  %v184 = vunpack.c.l.b16 %v54
  %v185 = vunpack.c.l.b16 %v55
  %v186 = vunpack.c.l.b16 %v56
  %v187 = vunpack.c.l.b16 %v57
  %v188 = vunpack.c.l.b16 %v58
  %v189 = vunpack.c.l.b16 %v59
  %v190 = vunpack.c.l.b16 %v60
  %v191 = vunpack.c.l.b16 %v61
  %v192 = vunpack.c.l.b16 %v62
  %v193 = vunpack.c.l.b16 %v63
  %v194 = vunpack.c.l.b16 %v64
  %v195 = vunpack.c.l.b16 %v65
  %v196 = vunpack.c.l.b16 %v66
  %v197 = vunpack.c.l.b16 %v67
  %v198 = vunpack.c.l.b16 %v68
  %v199 = vunpack.c.l.b16 %v69
  %v200 = vunpack.c.l.b16 %v70
  %v201 = vunpack.c.l.b16 %v71
  %v202 = vunpack.c.l.b16 %v72
  %v203 = vunpack.c.l.b16 %v73
  %v204 = vunpack.c.l.b16 %v74
  %v205 = vunpack.c.l.b16 %v75
  %v206 = vpack.c.b16 %v158, %v157
  %v207 = vpack.c.b16 %v160, %v159
  %v208 = vpack.c.b16 %v162, %v161
  %v209 = vpack.c.b16 %v164, %v163
  %v210 = vpack.c.b16 %v166, %v165
  %v211 = vpack.c.b16 %v168, %v167
  %v212 = vpack.c.b16 %v170, %v169
  %v213 = vpack.c.b16 %v172, %v171
  %v214 = vpack.c.b16 %v174, %v173
  %v215 = vpack.c.b16 %v176, %v175
  %v216 = vpack.c.b16 %v178, %v177
  %v217 = vpack.c.b16 %v180, %v179
  %v218 = vpack.c.b16 %v182, %v181
  %v219 = vpack.c.b16 %v184, %v183
  %v220 = vpack.c.b16 %v186, %v185
  %v221 = vpack.c.b16 %v188, %v187
  %v222 = vpack.c.b16 %v190, %v189
  %v223 = vpack.c.b16 %v192, %v191
  %v224 = vpack.c.b16 %v194, %v193
  %v225 = vpack.c.b16 %v196, %v195
  %v226 = vpack.c.b16 %v198, %v197
  %v227 = vpack.c.b16 %v200, %v199
  %v228 = vpack.c.b16 %v202, %v201
  %v229 = vpack.c.b16 %v204, %v203
  %v230 = vpack.c.b16 %v205, %v205
  %v288 = vunpack.c.l.b16 %v76
  %v289 = vunpack.c.h.b16 %v76
  %v290 = vunpack.c.l.b16 %v77
  %v291 = vunpack.c.h.b16 %v77
  %v292 = vunpack.c.l.b16 %v78
  %v293 = vunpack.c.h.b16 %v78
  %v294 = vunpack.c.l.b16 %v79
  %v295 = vunpack.c.h.b16 %v79
  %v296 = vunpack.c.l.b16 %v80
  %v297 = vunpack.c.h.b16 %v80
  %v298 = vunpack.c.l.b16 %v81
  %v299 = vunpack.c.h.b16 %v81
  %v300 = vunpack.c.l.b16 %v82
  %v301 = vunpack.c.h.b16 %v82
  %v302 = vunpack.c.l.b16 %v83
  %v303 = vunpack.c.h.b16 %v83
  %v304 = vunpack.c.l.b16 %v84
  %v305 = vunpack.c.h.b16 %v84
  %v306 = vunpack.c.l.b16 %v85
  %v307 = vunpack.c.h.b16 %v85
  %v308 = vunpack.c.l.b16 %v86
  %v309 = vunpack.c.h.b16 %v86
  %v310 = vunpack.c.l.b16 %v87
  %v311 = vunpack.c.h.b16 %v87
  %v312 = vunpack.c.l.b16 %v88
  %v313 = vunpack.c.h.b16 %v88
  %v314 = vunpack.c.l.b16 %v89
  %v315 = vunpack.c.h.b16 %v89
  %v316 = vunpack.c.l.b16 %v90
  %v317 = vunpack.c.h.b16 %v90
  %v318 = vunpack.c.l.b16 %v91
  %v319 = vunpack.c.h.b16 %v91
  %v320 = vunpack.c.l.b16 %v92
  %v321 = vunpack.c.h.b16 %v92
  %v322 = vunpack.c.l.b16 %v93
  %v323 = vunpack.c.h.b16 %v93
  %v324 = vunpack.c.l.b16 %v94
  %v325 = vunpack.c.h.b16 %v94
  %v326 = vunpack.c.l.b16 %v95
  %v327 = vunpack.c.h.b16 %v95
  %v328 = vunpack.c.l.b16 %v96
  %v329 = vunpack.c.h.b16 %v96
  %v330 = vunpack.c.l.b16 %v97
  %v331 = vunpack.c.h.b16 %v97
  %v332 = vunpack.c.l.b16 %v98
  %v333 = vunpack.c.h.b16 %v98
  %v334 = vunpack.c.l.b16 %v99
  %v335 = vunpack.c.h.b16 %v99
  %v336 = vunpack.c.l.b16 %v100
  %v337 = vunpack.c.h.b16 %v100
  %v338 = vunpack.c.l.b16 %v101
  %v339 = vunpack.c.h.b16 %v101
  %v340 = vunpack.c.l.b16 %v102
  %v341 = vunpack.c.h.b16 %v102
  %v342 = vunpack.c.l.b16 %v103
  %v343 = vunpack.c.h.b16 %v103
  %v344 = vunpack.c.l.b16 %v104
  %v345 = vunpack.c.h.b16 %v104
  %v346 = vunpack.c.l.b16 %v105
  %v347 = vunpack.c.h.b16 %v105
  %v348 = vunpack.c.l.b16 %v106
  %v349 = vunpack.c.h.b16 %v106
  %v350 = vunpack.c.l.b16 %v107
  %v351 = vunpack.c.h.b16 %v107
  %v352 = vpack.c.b16 %v292, %v288
  %v353 = vpack.c.b16 %v293, %v289
  %v354 = vpack.c.b16 %v294, %v290
  %v355 = vpack.c.b16 %v295, %v291
  %v356 = vpack.c.b16 %v300, %v296
  %v357 = vpack.c.b16 %v301, %v297
  %v358 = vpack.c.b16 %v302, %v298
  %v359 = vpack.c.b16 %v303, %v299
  %v360 = vpack.c.b16 %v308, %v304
  %v361 = vpack.c.b16 %v309, %v305
  %v362 = vpack.c.b16 %v310, %v306
  %v363 = vpack.c.b16 %v311, %v307
  %v364 = vpack.c.b16 %v316, %v312
  %v365 = vpack.c.b16 %v317, %v313
  %v366 = vpack.c.b16 %v318, %v314
  %v367 = vpack.c.b16 %v319, %v315
  %v368 = vpack.c.b16 %v324, %v320
  %v369 = vpack.c.b16 %v325, %v321
  %v370 = vpack.c.b16 %v326, %v322
  %v371 = vpack.c.b16 %v327, %v323
  %v372 = vpack.c.b16 %v332, %v328
  %v373 = vpack.c.b16 %v333, %v329
  %v374 = vpack.c.b16 %v334, %v330
  %v375 = vpack.c.b16 %v335, %v331
  %v376 = vpack.c.b16 %v340, %v336
  %v377 = vpack.c.b16 %v341, %v337
  %v378 = vpack.c.b16 %v342, %v338
  %v379 = vpack.c.b16 %v343, %v339
  %v380 = vpack.c.b16 %v348, %v344
  %v381 = vpack.c.b16 %v349, %v345
  %v382 = vpack.c.b16 %v350, %v346
  %v383 = vpack.c.b16 %v351, %v347
  %416 = vmatprep.subr.bf16.mxu0 %v353
  %417 = vmatpush1.bf16.msra.mxu0 %v352
  %418 = vmatprep.subr.bf16.mxu0 %v357
  %419 = vmatpush1.bf16.msra.mxu0 %v356
  %420 = vmatprep.subr.bf16.mxu0 %v361
  %421 = vmatpush1.bf16.msra.mxu0 %v360
  %422 = vmatprep.subr.bf16.mxu0 %v365
  %423 = vmatpush1.bf16.msra.mxu0 %v364
  %424 = vmatprep.subr.bf16.mxu0 %v369
  %425 = vmatpush1.bf16.msra.mxu0 %v368
  %426 = vmatprep.subr.bf16.mxu0 %v373
  %427 = vmatpush1.bf16.msra.mxu0 %v372
  %428 = vmatprep.subr.bf16.mxu0 %v377
  %429 = vmatpush1.bf16.msra.mxu0 %v376
  %430 = vmatprep.subr.bf16.mxu0 %v381
  %431 = vmatpush1.bf16.msra.mxu0 %v380
  %432 = vmatprep.subr.bf16.mxu0 0
  %433 = vmatpush1.bf16.msra.mxu0 0
  %434 = vmatprep.subr.bf16.mxu0 0
  %435 = vmatpush1.bf16.msra.mxu0 0
  %436 = vmatprep.subr.bf16.mxu0 0
  %437 = vmatpush1.bf16.msra.mxu0 0
  %438 = vmatprep.subr.bf16.mxu0 0
  %439 = vmatpush1.bf16.msra.mxu0 0
  %440 = vmatprep.subr.bf16.mxu0 0
  %441 = vmatpush1.bf16.msra.mxu0 0
  %442 = vmatprep.subr.bf16.mxu0 0
  %443 = vmatpush1.bf16.msra.mxu0 0
  %444 = vmatprep.subr.bf16.mxu0 0
  %445 = vmatpush1.bf16.msra.mxu0 0
  %446 = vmatprep.subr.bf16.mxu0 0
  %447 = vmatpush1.bf16.msra.mxu0 0
  %448 = vmatprep.mubr.bf16.mxu0 0
  %449 = vmatmul.mubr.bf16.gmra.mrb[0].mxu0 %v206
  %v450 = vpop.f32.mrb[0].mxu0
  %v451 = vadd.f32 0.0, %v450
  %v452 = vpop.f32.mrb[0].mxu0
  %v453 = vadd.f32 0.0, %v452
  %v454 = vpop.f32.mrb[0].mxu0
  %v455 = vadd.f32 0.0, %v454
  %v456 = vpop.f32.mrb[0].mxu0
  %v457 = vadd.f32 0.0, %v456
  %458 = vmatprep.mubr.bf16.mxu0 0
  %459 = vmatmul.mubr.bf16.gmra.mrb[0].mxu0 %v207
  %v460 = vpop.f32.mrb[0].mxu0
  %v461 = vadd.f32 0.0, %v460
  %v462 = vpop.f32.mrb[0].mxu0
  %v463 = vadd.f32 0.0, %v462
  %v464 = vpop.f32.mrb[0].mxu0
  %v465 = vadd.f32 0.0, %v464
  %v466 = vpop.f32.mrb[0].mxu0
  %v467 = vadd.f32 0.0, %v466
  %468 = vmatprep.mubr.bf16.mxu0 0
  %469 = vmatmul.mubr.bf16.gmra.mrb[0].mxu0 %v208
  %v470 = vpop.f32.mrb[0].mxu0
  %v471 = vadd.f32 0.0, %v470
  %v472 = vpop.f32.mrb[0].mxu0
  %v473 = vadd.f32 0.0, %v472
  %v474 = vpop.f32.mrb[0].mxu0
  %v475 = vadd.f32 0.0, %v474
  %v476 = vpop.f32.mrb[0].mxu0
  %v477 = vadd.f32 0.0, %v476
  %478 = vmatprep.mubr.bf16.mxu0 0
  %479 = vmatmul.mubr.bf16.gmra.mrb[0].mxu0 %v209
  %v480 = vpop.f32.mrb[0].mxu0
  %v481 = vadd.f32 0.0, %v480
  %v482 = vpop.f32.mrb[0].mxu0
  %v483 = vadd.f32 0.0, %v482
  %v484 = vpop.f32.mrb[0].mxu0
  %v485 = vadd.f32 0.0, %v484
  %v486 = vpop.f32.mrb[0].mxu0
  %v487 = vadd.f32 0.0, %v486
  %488 = vmatprep.mubr.bf16.mxu0 0
  %489 = vmatmul.mubr.bf16.gmra.mrb[0].mxu0 %v210
  %v490 = vpop.f32.mrb[0].mxu0
  %v491 = vadd.f32 0.0, %v490
  %v492 = vpop.f32.mrb[0].mxu0
  %v493 = vadd.f32 0.0, %v492
  %v494 = vpop.f32.mrb[0].mxu0
  %v495 = vadd.f32 0.0, %v494
  %v496 = vpop.f32.mrb[0].mxu0
  %v497 = vadd.f32 0.0, %v496
  %498 = vmatprep.mubr.bf16.mxu0 0
  %499 = vmatmul.mubr.bf16.gmra.mrb[0].mxu0 %v211
  %v500 = vpop.f32.mrb[0].mxu0
  %v501 = vadd.f32 0.0, %v500
  %v502 = vpop.f32.mrb[0].mxu0
  %v503 = vadd.f32 0.0, %v502
  %v504 = vpop.f32.mrb[0].mxu0
  %v505 = vadd.f32 0.0, %v504
  %v506 = vpop.f32.mrb[0].mxu0
  %v507 = vadd.f32 0.0, %v506
  %508 = vmatprep.mubr.bf16.mxu0 0
  %509 = vmatmul.mubr.bf16.gmra.mrb[0].mxu0 %v212
  %v510 = vpop.f32.mrb[0].mxu0
  %v511 = vadd.f32 0.0, %v510
  %v512 = vpop.f32.mrb[0].mxu0
  %v513 = vadd.f32 0.0, %v512
  %v514 = vpop.f32.mrb[0].mxu0
  %v515 = vadd.f32 0.0, %v514
  %v516 = vpop.f32.mrb[0].mxu0
  %v517 = vadd.f32 0.0, %v516
  %518 = vmatprep.mubr.bf16.mxu0 0
  %519 = vmatmul.mubr.bf16.gmra.mrb[0].mxu0 %v213
  %v520 = vpop.f32.mrb[0].mxu0
  %v521 = vadd.f32 0.0, %v520
  %v522 = vpop.f32.mrb[0].mxu0
  %v523 = vadd.f32 0.0, %v522
  %v524 = vpop.f32.mrb[0].mxu0
  %v525 = vadd.f32 0.0, %v524
  %v526 = vpop.f32.mrb[0].mxu0
  %v527 = vadd.f32 0.0, %v526
  %528 = vmatprep.mubr.bf16.mxu0 0
  %529 = vmatmul.mubr.bf16.gmra.mrb[0].mxu0 %v214
  %v530 = vpop.f32.mrb[0].mxu0
  %v531 = vadd.f32 0.0, %v530
  %v532 = vpop.f32.mrb[0].mxu0
  %v533 = vadd.f32 0.0, %v532
  %v534 = vpop.f32.mrb[0].mxu0
  %v535 = vadd.f32 0.0, %v534
  %v536 = vpop.f32.mrb[0].mxu0
  %v537 = vadd.f32 0.0, %v536
  %538 = vmatprep.mubr.bf16.mxu0 0
  %539 = vmatmul.mubr.bf16.gmra.mrb[0].mxu0 %v215
  %v540 = vpop.f32.mrb[0].mxu0
  %v541 = vadd.f32 0.0, %v540
  %v542 = vpop.f32.mrb[0].mxu0
  %v543 = vadd.f32 0.0, %v542
  %v544 = vpop.f32.mrb[0].mxu0
  %v545 = vadd.f32 0.0, %v544
  %v546 = vpop.f32.mrb[0].mxu0
  %v547 = vadd.f32 0.0, %v546
  %548 = vmatprep.mubr.bf16.mxu0 0
  %549 = vmatmul.mubr.bf16.gmra.mrb[0].mxu0 %v216
  %v550 = vpop.f32.mrb[0].mxu0
  %v551 = vadd.f32 0.0, %v550
  %v552 = vpop.f32.mrb[0].mxu0
  %v553 = vadd.f32 0.0, %v552
  %v554 = vpop.f32.mrb[0].mxu0
  %v555 = vadd.f32 0.0, %v554
  %v556 = vpop.f32.mrb[0].mxu0
  %v557 = vadd.f32 0.0, %v556
  %558 = vmatprep.mubr.bf16.mxu0 0
  %559 = vmatmul.mubr.bf16.gmra.mrb[0].mxu0 %v217
  %v560 = vpop.f32.mrb[0].mxu0
  %v561 = vadd.f32 0.0, %v560
  %v562 = vpop.f32.mrb[0].mxu0
  %v563 = vadd.f32 0.0, %v562
  %v564 = vpop.f32.mrb[0].mxu0
  %v565 = vadd.f32 0.0, %v564
  %v566 = vpop.f32.mrb[0].mxu0
  %v567 = vadd.f32 0.0, %v566
  %568 = vmatprep.mubr.bf16.mxu0 0
  %569 = vmatmul.mubr.bf16.gmra.mrb[0].mxu0 %v218
  %v570 = vpop.f32.mrb[0].mxu0
  %v571 = vadd.f32 0.0, %v570
  %v572 = vpop.f32.mrb[0].mxu0
  %v573 = vadd.f32 0.0, %v572
  %v574 = vpop.f32.mrb[0].mxu0
  %v575 = vadd.f32 0.0, %v574
  %v576 = vpop.f32.mrb[0].mxu0
  %v577 = vadd.f32 0.0, %v576
  %578 = vmatprep.mubr.bf16.mxu0 0
  %579 = vmatmul.mubr.bf16.gmra.mrb[0].mxu0 %v219
  %v580 = vpop.f32.mrb[0].mxu0
  %v581 = vadd.f32 0.0, %v580
  %v582 = vpop.f32.mrb[0].mxu0
  %v583 = vadd.f32 0.0, %v582
  %v584 = vpop.f32.mrb[0].mxu0
  %v585 = vadd.f32 0.0, %v584
  %v586 = vpop.f32.mrb[0].mxu0
  %v587 = vadd.f32 0.0, %v586
  %588 = vmatprep.mubr.bf16.mxu0 0
  %589 = vmatmul.mubr.bf16.gmra.mrb[0].mxu0 %v220
  %v590 = vpop.f32.mrb[0].mxu0
  %v591 = vadd.f32 0.0, %v590
  %v592 = vpop.f32.mrb[0].mxu0
  %v593 = vadd.f32 0.0, %v592
  %v594 = vpop.f32.mrb[0].mxu0
  %v595 = vadd.f32 0.0, %v594
  %v596 = vpop.f32.mrb[0].mxu0
  %v597 = vadd.f32 0.0, %v596
  %598 = vmatprep.mubr.bf16.mxu0 0
  %599 = vmatmul.mubr.bf16.gmra.mrb[0].mxu0 %v221
  %v600 = vpop.f32.mrb[0].mxu0
  %v601 = vadd.f32 0.0, %v600
  %v602 = vpop.f32.mrb[0].mxu0
  %v603 = vadd.f32 0.0, %v602
  %v604 = vpop.f32.mrb[0].mxu0
  %v605 = vadd.f32 0.0, %v604
  %v606 = vpop.f32.mrb[0].mxu0
  %v607 = vadd.f32 0.0, %v606
  %608 = vmatprep.mubr.bf16.mxu0 0
  %609 = vmatmul.mubr.bf16.gmra.mrb[0].mxu0 %v222
  %v610 = vpop.f32.mrb[0].mxu0
  %v611 = vadd.f32 0.0, %v610
  %v612 = vpop.f32.mrb[0].mxu0
  %v613 = vadd.f32 0.0, %v612
  %v614 = vpop.f32.mrb[0].mxu0
  %v615 = vadd.f32 0.0, %v614
  %v616 = vpop.f32.mrb[0].mxu0
  %v617 = vadd.f32 0.0, %v616
  %618 = vmatprep.mubr.bf16.mxu0 0
  %619 = vmatmul.mubr.bf16.gmra.mrb[0].mxu0 %v223
  %v620 = vpop.f32.mrb[0].mxu0
  %v621 = vadd.f32 0.0, %v620
  %v622 = vpop.f32.mrb[0].mxu0
  %v623 = vadd.f32 0.0, %v622
  %v624 = vpop.f32.mrb[0].mxu0
  %v625 = vadd.f32 0.0, %v624
  %v626 = vpop.f32.mrb[0].mxu0
  %v627 = vadd.f32 0.0, %v626
  %628 = vmatprep.mubr.bf16.mxu0 0
  %629 = vmatmul.mubr.bf16.gmra.mrb[0].mxu0 %v224
  %v630 = vpop.f32.mrb[0].mxu0
  %v631 = vadd.f32 0.0, %v630
  %v632 = vpop.f32.mrb[0].mxu0
  %v633 = vadd.f32 0.0, %v632
  %v634 = vpop.f32.mrb[0].mxu0
  %v635 = vadd.f32 0.0, %v634
  %v636 = vpop.f32.mrb[0].mxu0
  %v637 = vadd.f32 0.0, %v636
  %638 = vmatprep.mubr.bf16.mxu0 0
  %639 = vmatmul.mubr.bf16.gmra.mrb[0].mxu0 %v225
  %v640 = vpop.f32.mrb[0].mxu0
  %v641 = vadd.f32 0.0, %v640
  %v642 = vpop.f32.mrb[0].mxu0
  %v643 = vadd.f32 0.0, %v642
  %v644 = vpop.f32.mrb[0].mxu0
  %v645 = vadd.f32 0.0, %v644
  %v646 = vpop.f32.mrb[0].mxu0
  %v647 = vadd.f32 0.0, %v646
  %648 = vmatprep.mubr.bf16.mxu0 0
  %649 = vmatmul.mubr.bf16.gmra.mrb[0].mxu0 %v226
  %v650 = vpop.f32.mrb[0].mxu0
  %v651 = vadd.f32 0.0, %v650
  %v652 = vpop.f32.mrb[0].mxu0
  %v653 = vadd.f32 0.0, %v652
  %v654 = vpop.f32.mrb[0].mxu0
  %v655 = vadd.f32 0.0, %v654
  %v656 = vpop.f32.mrb[0].mxu0
  %v657 = vadd.f32 0.0, %v656
  %658 = vmatprep.mubr.bf16.mxu0 0
  %659 = vmatmul.mubr.bf16.gmra.mrb[0].mxu0 %v227
  %v660 = vpop.f32.mrb[0].mxu0
  %v661 = vadd.f32 0.0, %v660
  %v662 = vpop.f32.mrb[0].mxu0
  %v663 = vadd.f32 0.0, %v662
  %v664 = vpop.f32.mrb[0].mxu0
  %v665 = vadd.f32 0.0, %v664
  %v666 = vpop.f32.mrb[0].mxu0
  %v667 = vadd.f32 0.0, %v666
  %668 = vmatprep.mubr.bf16.mxu0 0
  %669 = vmatmul.mubr.bf16.gmra.mrb[0].mxu0 %v228
  %v670 = vpop.f32.mrb[0].mxu0
  %v671 = vadd.f32 0.0, %v670
  %v672 = vpop.f32.mrb[0].mxu0
  %v673 = vadd.f32 0.0, %v672
  %v674 = vpop.f32.mrb[0].mxu0
  %v675 = vadd.f32 0.0, %v674
  %v676 = vpop.f32.mrb[0].mxu0
  %v677 = vadd.f32 0.0, %v676
  %678 = vmatprep.mubr.bf16.mxu0 0
  %679 = vmatmul.mubr.bf16.gmra.mrb[0].mxu0 %v229
  %v680 = vpop.f32.mrb[0].mxu0
  %v681 = vadd.f32 0.0, %v680
  %v682 = vpop.f32.mrb[0].mxu0
  %v683 = vadd.f32 0.0, %v682
  %v684 = vpop.f32.mrb[0].mxu0
  %v685 = vadd.f32 0.0, %v684
  %v686 = vpop.f32.mrb[0].mxu0
  %v687 = vadd.f32 0.0, %v686
  %688 = vmatprep.mubr.bf16.mxu0 0
  %689 = vmatmul.mubr.bf16.gmra.mrb[0].mxu0 %v230
  %v690 = vpop.f32.mrb[0].mxu0
  %v691 = vadd.f32 0.0, %v690
  %v692 = vpop.f32.mrb[0].mxu0
  %v693 = vadd.f32 0.0, %v692
  %v694 = vpop.f32.mrb[0].mxu0
  %v695 = vpop.f32.mrb[0].mxu0
  %696 = vdwg.mxu0
  %697 = vmatprep.subr.bf16.mxu0 %v355
  %698 = vmatpush1.bf16.msra.mxu0 %v354
  %699 = vmatprep.subr.bf16.mxu0 %v359
  %700 = vmatpush1.bf16.msra.mxu0 %v358
  %701 = vmatprep.subr.bf16.mxu0 %v363
  %702 = vmatpush1.bf16.msra.mxu0 %v362
  %703 = vmatprep.subr.bf16.mxu0 %v367
  %704 = vmatpush1.bf16.msra.mxu0 %v366
  %705 = vmatprep.subr.bf16.mxu0 %v371
  %706 = vmatpush1.bf16.msra.mxu0 %v370
  %707 = vmatprep.subr.bf16.mxu0 %v375
  %708 = vmatpush1.bf16.msra.mxu0 %v374
  %709 = vmatprep.subr.bf16.mxu0 %v379
  %710 = vmatpush1.bf16.msra.mxu0 %v378
  %711 = vmatprep.subr.bf16.mxu0 %v383
  %712 = vmatpush1.bf16.msra.mxu0 %v382
  %713 = vmatprep.subr.bf16.mxu0 0
  %714 = vmatpush1.bf16.msra.mxu0 0
  %715 = vmatprep.subr.bf16.mxu0 0
  %716 = vmatpush1.bf16.msra.mxu0 0
  %717 = vmatprep.subr.bf16.mxu0 0
  %718 = vmatpush1.bf16.msra.mxu0 0
  %719 = vmatprep.subr.bf16.mxu0 0
  %720 = vmatpush1.bf16.msra.mxu0 0
  %721 = vmatprep.subr.bf16.mxu0 0
  %722 = vmatpush1.bf16.msra.mxu0 0
  %723 = vmatprep.subr.bf16.mxu0 0
  %724 = vmatpush1.bf16.msra.mxu0 0
  %725 = vmatprep.subr.bf16.mxu0 0
  %726 = vmatpush1.bf16.msra.mxu0 0
  %727 = vmatprep.subr.bf16.mxu0 0
  %728 = vmatpush1.bf16.msra.mxu0 0
  %729 = vmatprep.mubr.bf16.mxu0 0
  %730 = vmatmul.mubr.bf16.gmra.mrb[0].mxu0 %v206
  %v731 = vpop.f32.mrb[0].mxu0
  %v732 = vadd.f32 0.0, %v731
  %v733 = vpop.f32.mrb[0].mxu0
  %v734 = vadd.f32 0.0, %v733
  %v735 = vpop.f32.mrb[0].mxu0
  %v736 = vadd.f32 0.0, %v735
  %v737 = vpop.f32.mrb[0].mxu0
  %v738 = vadd.f32 0.0, %v737
  %739 = vmatprep.mubr.bf16.mxu0 0
  %740 = vmatmul.mubr.bf16.gmra.mrb[0].mxu0 %v207
  %v741 = vpop.f32.mrb[0].mxu0
  %v742 = vadd.f32 0.0, %v741
  %v743 = vpop.f32.mrb[0].mxu0
  %v744 = vadd.f32 0.0, %v743
  %v745 = vpop.f32.mrb[0].mxu0
  %v746 = vadd.f32 0.0, %v745
  %v747 = vpop.f32.mrb[0].mxu0
  %v748 = vadd.f32 0.0, %v747
  %749 = vmatprep.mubr.bf16.mxu0 0
  %750 = vmatmul.mubr.bf16.gmra.mrb[0].mxu0 %v208
  %v751 = vpop.f32.mrb[0].mxu0
  %v752 = vadd.f32 0.0, %v751
  %v753 = vpop.f32.mrb[0].mxu0
  %v754 = vadd.f32 0.0, %v753
  %v755 = vpop.f32.mrb[0].mxu0
  %v756 = vadd.f32 0.0, %v755
  %v757 = vpop.f32.mrb[0].mxu0
  %v758 = vadd.f32 0.0, %v757
  %759 = vmatprep.mubr.bf16.mxu0 0
  %760 = vmatmul.mubr.bf16.gmra.mrb[0].mxu0 %v209
  %v761 = vpop.f32.mrb[0].mxu0
  %v762 = vadd.f32 0.0, %v761
  %v763 = vpop.f32.mrb[0].mxu0
  %v764 = vadd.f32 0.0, %v763
  %v765 = vpop.f32.mrb[0].mxu0
  %v766 = vadd.f32 0.0, %v765
  %v767 = vpop.f32.mrb[0].mxu0
  %v768 = vadd.f32 0.0, %v767
  %769 = vmatprep.mubr.bf16.mxu0 0
  %770 = vmatmul.mubr.bf16.gmra.mrb[0].mxu0 %v210
  %v771 = vpop.f32.mrb[0].mxu0
  %v772 = vadd.f32 0.0, %v771
  %v773 = vpop.f32.mrb[0].mxu0
  %v774 = vadd.f32 0.0, %v773
  %v775 = vpop.f32.mrb[0].mxu0
  %v776 = vadd.f32 0.0, %v775
  %v777 = vpop.f32.mrb[0].mxu0
  %v778 = vadd.f32 0.0, %v777
  %779 = vmatprep.mubr.bf16.mxu0 0
  %780 = vmatmul.mubr.bf16.gmra.mrb[0].mxu0 %v211
  %v781 = vpop.f32.mrb[0].mxu0
  %v782 = vadd.f32 0.0, %v781
  %v783 = vpop.f32.mrb[0].mxu0
  %v784 = vadd.f32 0.0, %v783
  %v785 = vpop.f32.mrb[0].mxu0
  %v786 = vadd.f32 0.0, %v785
  %v787 = vpop.f32.mrb[0].mxu0
  %v788 = vadd.f32 0.0, %v787
  %789 = vmatprep.mubr.bf16.mxu0 0
  %790 = vmatmul.mubr.bf16.gmra.mrb[0].mxu0 %v212
  %v791 = vpop.f32.mrb[0].mxu0
  %v792 = vadd.f32 0.0, %v791
  %v793 = vpop.f32.mrb[0].mxu0
  %v794 = vadd.f32 0.0, %v793
  %v795 = vpop.f32.mrb[0].mxu0
  %v796 = vadd.f32 0.0, %v795
  %v797 = vpop.f32.mrb[0].mxu0
  %v798 = vadd.f32 0.0, %v797
  %799 = vmatprep.mubr.bf16.mxu0 0
  %800 = vmatmul.mubr.bf16.gmra.mrb[0].mxu0 %v213
  %v801 = vpop.f32.mrb[0].mxu0
  %v802 = vadd.f32 0.0, %v801
  %v803 = vpop.f32.mrb[0].mxu0
  %v804 = vadd.f32 0.0, %v803
  %v805 = vpop.f32.mrb[0].mxu0
  %v806 = vadd.f32 0.0, %v805
  %v807 = vpop.f32.mrb[0].mxu0
  %v808 = vadd.f32 0.0, %v807
  %809 = vmatprep.mubr.bf16.mxu0 0
  %810 = vmatmul.mubr.bf16.gmra.mrb[0].mxu0 %v214
  %v811 = vpop.f32.mrb[0].mxu0
  %v812 = vadd.f32 0.0, %v811
  %v813 = vpop.f32.mrb[0].mxu0
  %v814 = vadd.f32 0.0, %v813
  %v815 = vpop.f32.mrb[0].mxu0
  %v816 = vadd.f32 0.0, %v815
  %v817 = vpop.f32.mrb[0].mxu0
  %v818 = vadd.f32 0.0, %v817
  %819 = vmatprep.mubr.bf16.mxu0 0
  %820 = vmatmul.mubr.bf16.gmra.mrb[0].mxu0 %v215
  %v821 = vpop.f32.mrb[0].mxu0
  %v822 = vadd.f32 0.0, %v821
  %v823 = vpop.f32.mrb[0].mxu0
  %v824 = vadd.f32 0.0, %v823
  %v825 = vpop.f32.mrb[0].mxu0
  %v826 = vadd.f32 0.0, %v825
  %v827 = vpop.f32.mrb[0].mxu0
  %v828 = vadd.f32 0.0, %v827
  %829 = vmatprep.mubr.bf16.mxu0 0
  %830 = vmatmul.mubr.bf16.gmra.mrb[0].mxu0 %v216
  %v831 = vpop.f32.mrb[0].mxu0
  %v832 = vadd.f32 0.0, %v831
  %v833 = vpop.f32.mrb[0].mxu0
  %v834 = vadd.f32 0.0, %v833
  %v835 = vpop.f32.mrb[0].mxu0
  %v836 = vadd.f32 0.0, %v835
  %v837 = vpop.f32.mrb[0].mxu0
  %v838 = vadd.f32 0.0, %v837
  %839 = vmatprep.mubr.bf16.mxu0 0
  %840 = vmatmul.mubr.bf16.gmra.mrb[0].mxu0 %v217
  %v841 = vpop.f32.mrb[0].mxu0
  %v842 = vadd.f32 0.0, %v841
  %v843 = vpop.f32.mrb[0].mxu0
  %v844 = vadd.f32 0.0, %v843
  %v845 = vpop.f32.mrb[0].mxu0
  %v846 = vadd.f32 0.0, %v845
  %v847 = vpop.f32.mrb[0].mxu0
  %v848 = vadd.f32 0.0, %v847
  %849 = vmatprep.mubr.bf16.mxu0 0
  %850 = vmatmul.mubr.bf16.gmra.mrb[0].mxu0 %v218
  %v851 = vpop.f32.mrb[0].mxu0
  %v852 = vadd.f32 0.0, %v851
  %v853 = vpop.f32.mrb[0].mxu0
  %v854 = vadd.f32 0.0, %v853
  %v855 = vpop.f32.mrb[0].mxu0
  %v856 = vadd.f32 0.0, %v855
  %v857 = vpop.f32.mrb[0].mxu0
  %v858 = vadd.f32 0.0, %v857
  %859 = vmatprep.mubr.bf16.mxu0 0
  %860 = vmatmul.mubr.bf16.gmra.mrb[0].mxu0 %v219
  %v861 = vpop.f32.mrb[0].mxu0
  %v862 = vadd.f32 0.0, %v861
  %v863 = vpop.f32.mrb[0].mxu0
  %v864 = vadd.f32 0.0, %v863
  %v865 = vpop.f32.mrb[0].mxu0
  %v866 = vadd.f32 0.0, %v865
  %v867 = vpop.f32.mrb[0].mxu0
  %v868 = vadd.f32 0.0, %v867
  %869 = vmatprep.mubr.bf16.mxu0 0
  %870 = vmatmul.mubr.bf16.gmra.mrb[0].mxu0 %v220
  %v871 = vpop.f32.mrb[0].mxu0
  %v872 = vadd.f32 0.0, %v871
  %v873 = vpop.f32.mrb[0].mxu0
  %v874 = vadd.f32 0.0, %v873
  %v875 = vpop.f32.mrb[0].mxu0
  %v876 = vadd.f32 0.0, %v875
  %v877 = vpop.f32.mrb[0].mxu0
  %v878 = vadd.f32 0.0, %v877
  %879 = vmatprep.mubr.bf16.mxu0 0
  %880 = vmatmul.mubr.bf16.gmra.mrb[0].mxu0 %v221
  %v881 = vpop.f32.mrb[0].mxu0
  %v882 = vadd.f32 0.0, %v881
  %v883 = vpop.f32.mrb[0].mxu0
  %v884 = vadd.f32 0.0, %v883
  %v885 = vpop.f32.mrb[0].mxu0
  %v886 = vadd.f32 0.0, %v885
  %v887 = vpop.f32.mrb[0].mxu0
  %v888 = vadd.f32 0.0, %v887
  %889 = vmatprep.mubr.bf16.mxu0 0
  %890 = vmatmul.mubr.bf16.gmra.mrb[0].mxu0 %v222
  %v891 = vpop.f32.mrb[0].mxu0
  %v892 = vadd.f32 0.0, %v891
  %v893 = vpop.f32.mrb[0].mxu0
  %v894 = vadd.f32 0.0, %v893
  %v895 = vpop.f32.mrb[0].mxu0
  %v896 = vadd.f32 0.0, %v895
  %v897 = vpop.f32.mrb[0].mxu0
  %v898 = vadd.f32 0.0, %v897
  %899 = vmatprep.mubr.bf16.mxu0 0
  %900 = vmatmul.mubr.bf16.gmra.mrb[0].mxu0 %v223
  %v901 = vpop.f32.mrb[0].mxu0
  %v902 = vadd.f32 0.0, %v901
  %v903 = vpop.f32.mrb[0].mxu0
  %v904 = vadd.f32 0.0, %v903
  %v905 = vpop.f32.mrb[0].mxu0
  %v906 = vadd.f32 0.0, %v905
  %v907 = vpop.f32.mrb[0].mxu0
  %v908 = vadd.f32 0.0, %v907
  %909 = vmatprep.mubr.bf16.mxu0 0
  %910 = vmatmul.mubr.bf16.gmra.mrb[0].mxu0 %v224
  %v911 = vpop.f32.mrb[0].mxu0
  %v912 = vadd.f32 0.0, %v911
  %v913 = vpop.f32.mrb[0].mxu0
  %v914 = vadd.f32 0.0, %v913
  %v915 = vpop.f32.mrb[0].mxu0
  %v916 = vadd.f32 0.0, %v915
  %v917 = vpop.f32.mrb[0].mxu0
  %v918 = vadd.f32 0.0, %v917
  %919 = vmatprep.mubr.bf16.mxu0 0
  %920 = vmatmul.mubr.bf16.gmra.mrb[0].mxu0 %v225
  %v921 = vpop.f32.mrb[0].mxu0
  %v922 = vadd.f32 0.0, %v921
  %v923 = vpop.f32.mrb[0].mxu0
  %v924 = vadd.f32 0.0, %v923
  %v925 = vpop.f32.mrb[0].mxu0
  %v926 = vadd.f32 0.0, %v925
  %v927 = vpop.f32.mrb[0].mxu0
  %v928 = vadd.f32 0.0, %v927
  %929 = vmatprep.mubr.bf16.mxu0 0
  %930 = vmatmul.mubr.bf16.gmra.mrb[0].mxu0 %v226
  %v931 = vpop.f32.mrb[0].mxu0
  %v932 = vadd.f32 0.0, %v931
  %v933 = vpop.f32.mrb[0].mxu0
  %v934 = vadd.f32 0.0, %v933
  %v935 = vpop.f32.mrb[0].mxu0
  %v936 = vadd.f32 0.0, %v935
  %v937 = vpop.f32.mrb[0].mxu0
  %v938 = vadd.f32 0.0, %v937
  %939 = vmatprep.mubr.bf16.mxu0 0
  %940 = vmatmul.mubr.bf16.gmra.mrb[0].mxu0 %v227
  %v941 = vpop.f32.mrb[0].mxu0
  %v942 = vadd.f32 0.0, %v941
  %v943 = vpop.f32.mrb[0].mxu0
  %v944 = vadd.f32 0.0, %v943
  %v945 = vpop.f32.mrb[0].mxu0
  %v946 = vadd.f32 0.0, %v945
  %v947 = vpop.f32.mrb[0].mxu0
  %v948 = vadd.f32 0.0, %v947
  %949 = vmatprep.mubr.bf16.mxu0 0
  %950 = vmatmul.mubr.bf16.gmra.mrb[0].mxu0 %v228
  %v951 = vpop.f32.mrb[0].mxu0
  %v952 = vadd.f32 0.0, %v951
  %v953 = vpop.f32.mrb[0].mxu0
  %v954 = vadd.f32 0.0, %v953
  %v955 = vpop.f32.mrb[0].mxu0
  %v956 = vadd.f32 0.0, %v955
  %v957 = vpop.f32.mrb[0].mxu0
  %v958 = vadd.f32 0.0, %v957
  %959 = vmatprep.mubr.bf16.mxu0 0
  %960 = vmatmul.mubr.bf16.gmra.mrb[0].mxu0 %v229
  %v961 = vpop.f32.mrb[0].mxu0
  %v962 = vadd.f32 0.0, %v961
  %v963 = vpop.f32.mrb[0].mxu0
  %v964 = vadd.f32 0.0, %v963
  %v965 = vpop.f32.mrb[0].mxu0
  %v966 = vadd.f32 0.0, %v965
  %v967 = vpop.f32.mrb[0].mxu0
  %v968 = vadd.f32 0.0, %v967
  %969 = vmatprep.mubr.bf16.mxu0 0
  %970 = vmatmul.mubr.bf16.gmra.mrb[0].mxu0 %v230
  %v971 = vpop.f32.mrb[0].mxu0
  %v972 = vadd.f32 0.0, %v971
  %v973 = vpop.f32.mrb[0].mxu0
  %v974 = vadd.f32 0.0, %v973
  %v975 = vpop.f32.mrb[0].mxu0
  %v976 = vpop.f32.mrb[0].mxu0
  %977 = vdwg.mxu0
  %v978 = vmax.f32 %v451, 0.0
  %v979 = vmax.f32 %v453, 0.0
  %v980 = vmax.f32 %v732, 0.0
  %v981 = vmax.f32 %v734, 0.0
  %v982 = vmax.f32 %v455, 0.0
  %v983 = vmax.f32 %v457, 0.0
  %v984 = vmax.f32 %v736, 0.0
  %v985 = vmax.f32 %v738, 0.0
  %v986 = vmax.f32 %v461, 0.0
  %v987 = vmax.f32 %v463, 0.0
  %v988 = vmax.f32 %v742, 0.0
  %v989 = vmax.f32 %v744, 0.0
  %v990 = vmax.f32 %v465, 0.0
  %v991 = vmax.f32 %v467, 0.0
  %v992 = vmax.f32 %v746, 0.0
  %v993 = vmax.f32 %v748, 0.0
  %v994 = vmax.f32 %v471, 0.0
  %v995 = vmax.f32 %v473, 0.0
  %v996 = vmax.f32 %v752, 0.0
  %v997 = vmax.f32 %v754, 0.0
  %v998 = vmax.f32 %v475, 0.0
  %v999 = vmax.f32 %v477, 0.0
  %v1000 = vmax.f32 %v756, 0.0
  %v1001 = vmax.f32 %v758, 0.0
  %v1002 = vmax.f32 %v481, 0.0
  %v1003 = vmax.f32 %v483, 0.0
  %v1004 = vmax.f32 %v762, 0.0
  %v1005 = vmax.f32 %v764, 0.0
  %v1006 = vmax.f32 %v485, 0.0
  %v1007 = vmax.f32 %v487, 0.0
  %v1008 = vmax.f32 %v766, 0.0
  %v1009 = vmax.f32 %v768, 0.0
  %v1010 = vmax.f32 %v491, 0.0
  %v1011 = vmax.f32 %v493, 0.0
  %v1012 = vmax.f32 %v772, 0.0
  %v1013 = vmax.f32 %v774, 0.0
  %v1014 = vmax.f32 %v495, 0.0
  %v1015 = vmax.f32 %v497, 0.0
  %v1016 = vmax.f32 %v776, 0.0
  %v1017 = vmax.f32 %v778, 0.0
  %v1018 = vmax.f32 %v501, 0.0
  %v1019 = vmax.f32 %v503, 0.0
  %v1020 = vmax.f32 %v782, 0.0
  %v1021 = vmax.f32 %v784, 0.0
  %v1022 = vmax.f32 %v505, 0.0
  %v1023 = vmax.f32 %v507, 0.0
  %v1024 = vmax.f32 %v786, 0.0
  %v1025 = vmax.f32 %v788, 0.0
  %v1026 = vmax.f32 %v511, 0.0
  %v1027 = vmax.f32 %v513, 0.0
  %v1028 = vmax.f32 %v792, 0.0
  %v1029 = vmax.f32 %v794, 0.0
  %v1030 = vmax.f32 %v515, 0.0
  %v1031 = vmax.f32 %v517, 0.0
  %v1032 = vmax.f32 %v796, 0.0
  %v1033 = vmax.f32 %v798, 0.0
  %v1034 = vmax.f32 %v521, 0.0
  %v1035 = vmax.f32 %v523, 0.0
  %v1036 = vmax.f32 %v802, 0.0
  %v1037 = vmax.f32 %v804, 0.0
  %v1038 = vmax.f32 %v525, 0.0
  %v1039 = vmax.f32 %v527, 0.0
  %v1040 = vmax.f32 %v806, 0.0
  %v1041 = vmax.f32 %v808, 0.0
  %v1042 = vmax.f32 %v531, 0.0
  %v1043 = vmax.f32 %v533, 0.0
  %v1044 = vmax.f32 %v812, 0.0
  %v1045 = vmax.f32 %v814, 0.0
  %v1046 = vmax.f32 %v535, 0.0
  %v1047 = vmax.f32 %v537, 0.0
  %v1048 = vmax.f32 %v816, 0.0
  %v1049 = vmax.f32 %v818, 0.0
  %v1050 = vmax.f32 %v541, 0.0
  %v1051 = vmax.f32 %v543, 0.0
  %v1052 = vmax.f32 %v822, 0.0
  %v1053 = vmax.f32 %v824, 0.0
  %v1054 = vmax.f32 %v545, 0.0
  %v1055 = vmax.f32 %v547, 0.0
  %v1056 = vmax.f32 %v826, 0.0
  %v1057 = vmax.f32 %v828, 0.0
  %v1058 = vmax.f32 %v551, 0.0
  %v1059 = vmax.f32 %v553, 0.0
  %v1060 = vmax.f32 %v832, 0.0
  %v1061 = vmax.f32 %v834, 0.0
  %v1062 = vmax.f32 %v555, 0.0
  %v1063 = vmax.f32 %v557, 0.0
  %v1064 = vmax.f32 %v836, 0.0
  %v1065 = vmax.f32 %v838, 0.0
  %v1066 = vmax.f32 %v561, 0.0
  %v1067 = vmax.f32 %v563, 0.0
  %v1068 = vmax.f32 %v842, 0.0
  %v1069 = vmax.f32 %v844, 0.0
  %v1070 = vmax.f32 %v565, 0.0
  %v1071 = vmax.f32 %v567, 0.0
  %v1072 = vmax.f32 %v846, 0.0
  %v1073 = vmax.f32 %v848, 0.0
  %v1074 = vmax.f32 %v571, 0.0
  %v1075 = vmax.f32 %v573, 0.0
  %v1076 = vmax.f32 %v852, 0.0
  %v1077 = vmax.f32 %v854, 0.0
  %v1078 = vmax.f32 %v575, 0.0
  %v1079 = vmax.f32 %v577, 0.0
  %v1080 = vmax.f32 %v856, 0.0
  %v1081 = vmax.f32 %v858, 0.0
  %v1082 = vmax.f32 %v581, 0.0
  %v1083 = vmax.f32 %v583, 0.0
  %v1084 = vmax.f32 %v862, 0.0
  %v1085 = vmax.f32 %v864, 0.0
  %v1086 = vmax.f32 %v585, 0.0
  %v1087 = vmax.f32 %v587, 0.0
  %v1088 = vmax.f32 %v866, 0.0
  %v1089 = vmax.f32 %v868, 0.0
  %v1090 = vmax.f32 %v591, 0.0
  %v1091 = vmax.f32 %v593, 0.0
  %v1092 = vmax.f32 %v872, 0.0
  %v1093 = vmax.f32 %v874, 0.0
  %v1094 = vmax.f32 %v595, 0.0
  %v1095 = vmax.f32 %v597, 0.0
  %v1096 = vmax.f32 %v876, 0.0
  %v1097 = vmax.f32 %v878, 0.0
  %v1098 = vmax.f32 %v601, 0.0
  %v1099 = vmax.f32 %v603, 0.0
  %v1100 = vmax.f32 %v882, 0.0
  %v1101 = vmax.f32 %v884, 0.0
  %v1102 = vmax.f32 %v605, 0.0
  %v1103 = vmax.f32 %v607, 0.0
  %v1104 = vmax.f32 %v886, 0.0
  %v1105 = vmax.f32 %v888, 0.0
  %v1106 = vmax.f32 %v611, 0.0
  %v1107 = vmax.f32 %v613, 0.0
  %v1108 = vmax.f32 %v892, 0.0
  %v1109 = vmax.f32 %v894, 0.0
  %v1110 = vmax.f32 %v615, 0.0
  %v1111 = vmax.f32 %v617, 0.0
  %v1112 = vmax.f32 %v896, 0.0
  %v1113 = vmax.f32 %v898, 0.0
  %v1114 = vmax.f32 %v621, 0.0
  %v1115 = vmax.f32 %v623, 0.0
  %v1116 = vmax.f32 %v902, 0.0
  %v1117 = vmax.f32 %v904, 0.0
  %v1118 = vmax.f32 %v625, 0.0
  %v1119 = vmax.f32 %v627, 0.0
  %v1120 = vmax.f32 %v906, 0.0
  %v1121 = vmax.f32 %v908, 0.0
  %v1122 = vmax.f32 %v631, 0.0
  %v1123 = vmax.f32 %v633, 0.0
  %v1124 = vmax.f32 %v912, 0.0
  %v1125 = vmax.f32 %v914, 0.0
  %v1126 = vmax.f32 %v635, 0.0
  %v1127 = vmax.f32 %v637, 0.0
  %v1128 = vmax.f32 %v916, 0.0
  %v1129 = vmax.f32 %v918, 0.0
  %v1130 = vmax.f32 %v641, 0.0
  %v1131 = vmax.f32 %v643, 0.0
  %v1132 = vmax.f32 %v922, 0.0
  %v1133 = vmax.f32 %v924, 0.0
  %v1134 = vmax.f32 %v645, 0.0
  %v1135 = vmax.f32 %v647, 0.0
  %v1136 = vmax.f32 %v926, 0.0
  %v1137 = vmax.f32 %v928, 0.0
  %v1138 = vmax.f32 %v651, 0.0
  %v1139 = vmax.f32 %v653, 0.0
  %v1140 = vmax.f32 %v932, 0.0
  %v1141 = vmax.f32 %v934, 0.0
  %v1142 = vmax.f32 %v655, 0.0
  %v1143 = vmax.f32 %v657, 0.0
  %v1144 = vmax.f32 %v936, 0.0
  %v1145 = vmax.f32 %v938, 0.0
  %v1146 = vmax.f32 %v661, 0.0
  %v1147 = vmax.f32 %v663, 0.0
  %v1148 = vmax.f32 %v942, 0.0
  %v1149 = vmax.f32 %v944, 0.0
  %v1150 = vmax.f32 %v665, 0.0
  %v1151 = vmax.f32 %v667, 0.0
  %v1152 = vmax.f32 %v946, 0.0
  %v1153 = vmax.f32 %v948, 0.0
  %v1154 = vmax.f32 %v671, 0.0
  %v1155 = vmax.f32 %v673, 0.0
  %v1156 = vmax.f32 %v952, 0.0
  %v1157 = vmax.f32 %v954, 0.0
  %v1158 = vmax.f32 %v675, 0.0
  %v1159 = vmax.f32 %v677, 0.0
  %v1160 = vmax.f32 %v956, 0.0
  %v1161 = vmax.f32 %v958, 0.0
  %v1162 = vmax.f32 %v681, 0.0
  %v1163 = vmax.f32 %v683, 0.0
  %v1164 = vmax.f32 %v962, 0.0
  %v1165 = vmax.f32 %v964, 0.0
  %v1166 = vmax.f32 %v685, 0.0
  %v1167 = vmax.f32 %v687, 0.0
  %v1168 = vmax.f32 %v966, 0.0
  %v1169 = vmax.f32 %v968, 0.0
  %v1170 = vmax.f32 %v691, 0.0
  %v1171 = vmax.f32 %v693, 0.0
  %v1172 = vmax.f32 %v972, 0.0
  %v1173 = vmax.f32 %v974, 0.0
  %v1174 = vpack.c.bf16 %v982, %v978
  %v1175 = vpack.c.bf16 %v983, %v979
  %v1176 = vpack.c.bf16 %v984, %v980
  %v1177 = vpack.c.bf16 %v985, %v981
  %v1178 = vpack.c.bf16 %v990, %v986
  %v1179 = vpack.c.bf16 %v991, %v987
  %v1180 = vpack.c.bf16 %v992, %v988
  %v1181 = vpack.c.bf16 %v993, %v989
  %v1182 = vpack.c.bf16 %v998, %v994
  %v1183 = vpack.c.bf16 %v999, %v995
  %v1184 = vpack.c.bf16 %v1000, %v996
  %v1185 = vpack.c.bf16 %v1001, %v997
  %v1186 = vpack.c.bf16 %v1006, %v1002
  %v1187 = vpack.c.bf16 %v1007, %v1003
  %v1188 = vpack.c.bf16 %v1008, %v1004
  %v1189 = vpack.c.bf16 %v1009, %v1005
  %v1190 = vpack.c.bf16 %v1014, %v1010
  %v1191 = vpack.c.bf16 %v1015, %v1011
  %v1192 = vpack.c.bf16 %v1016, %v1012
  %v1193 = vpack.c.bf16 %v1017, %v1013
  %v1194 = vpack.c.bf16 %v1022, %v1018
  %v1195 = vpack.c.bf16 %v1023, %v1019
  %v1196 = vpack.c.bf16 %v1024, %v1020
  %v1197 = vpack.c.bf16 %v1025, %v1021
  %v1198 = vpack.c.bf16 %v1030, %v1026
  %v1199 = vpack.c.bf16 %v1031, %v1027
  %v1200 = vpack.c.bf16 %v1032, %v1028
  %v1201 = vpack.c.bf16 %v1033, %v1029
  %v1202 = vpack.c.bf16 %v1038, %v1034
  %v1203 = vpack.c.bf16 %v1039, %v1035
  %v1204 = vpack.c.bf16 %v1040, %v1036
  %v1205 = vpack.c.bf16 %v1041, %v1037
  %v1206 = vpack.c.bf16 %v1046, %v1042
  %v1207 = vpack.c.bf16 %v1047, %v1043
  %v1208 = vpack.c.bf16 %v1048, %v1044
  %v1209 = vpack.c.bf16 %v1049, %v1045
  %v1210 = vpack.c.bf16 %v1054, %v1050
  %v1211 = vpack.c.bf16 %v1055, %v1051
  %v1212 = vpack.c.bf16 %v1056, %v1052
  %v1213 = vpack.c.bf16 %v1057, %v1053
  %v1214 = vpack.c.bf16 %v1062, %v1058
  %v1215 = vpack.c.bf16 %v1063, %v1059
  %v1216 = vpack.c.bf16 %v1064, %v1060
  %v1217 = vpack.c.bf16 %v1065, %v1061
  %v1218 = vpack.c.bf16 %v1070, %v1066
  %v1219 = vpack.c.bf16 %v1071, %v1067
  %v1220 = vpack.c.bf16 %v1072, %v1068
  %v1221 = vpack.c.bf16 %v1073, %v1069
  %v1222 = vpack.c.bf16 %v1078, %v1074
  %v1223 = vpack.c.bf16 %v1079, %v1075
  %v1224 = vpack.c.bf16 %v1080, %v1076
  %v1225 = vpack.c.bf16 %v1081, %v1077
  %v1226 = vpack.c.bf16 %v1086, %v1082
  %v1227 = vpack.c.bf16 %v1087, %v1083
  %v1228 = vpack.c.bf16 %v1088, %v1084
  %v1229 = vpack.c.bf16 %v1089, %v1085
  %v1230 = vpack.c.bf16 %v1094, %v1090
  %v1231 = vpack.c.bf16 %v1095, %v1091
  %v1232 = vpack.c.bf16 %v1096, %v1092
  %v1233 = vpack.c.bf16 %v1097, %v1093
  %v1234 = vpack.c.bf16 %v1102, %v1098
  %v1235 = vpack.c.bf16 %v1103, %v1099
  %v1236 = vpack.c.bf16 %v1104, %v1100
  %v1237 = vpack.c.bf16 %v1105, %v1101
  %v1238 = vpack.c.bf16 %v1110, %v1106
  %v1239 = vpack.c.bf16 %v1111, %v1107
  %v1240 = vpack.c.bf16 %v1112, %v1108
  %v1241 = vpack.c.bf16 %v1113, %v1109
  %v1242 = vpack.c.bf16 %v1118, %v1114
  %v1243 = vpack.c.bf16 %v1119, %v1115
  %v1244 = vpack.c.bf16 %v1120, %v1116
  %v1245 = vpack.c.bf16 %v1121, %v1117
  %v1246 = vpack.c.bf16 %v1126, %v1122
  %v1247 = vpack.c.bf16 %v1127, %v1123
  %v1248 = vpack.c.bf16 %v1128, %v1124
  %v1249 = vpack.c.bf16 %v1129, %v1125
  %v1250 = vpack.c.bf16 %v1134, %v1130
  %v1251 = vpack.c.bf16 %v1135, %v1131
  %v1252 = vpack.c.bf16 %v1136, %v1132
  %v1253 = vpack.c.bf16 %v1137, %v1133
  %v1254 = vpack.c.bf16 %v1142, %v1138
  %v1255 = vpack.c.bf16 %v1143, %v1139
  %v1256 = vpack.c.bf16 %v1144, %v1140
  %v1257 = vpack.c.bf16 %v1145, %v1141
  %v1258 = vpack.c.bf16 %v1150, %v1146
  %v1259 = vpack.c.bf16 %v1151, %v1147
  %v1260 = vpack.c.bf16 %v1152, %v1148
  %v1261 = vpack.c.bf16 %v1153, %v1149
  %v1262 = vpack.c.bf16 %v1158, %v1154
  %v1263 = vpack.c.bf16 %v1159, %v1155
  %v1264 = vpack.c.bf16 %v1160, %v1156
  %v1265 = vpack.c.bf16 %v1161, %v1157
  %v1266 = vpack.c.bf16 %v1166, %v1162
  %v1267 = vpack.c.bf16 %v1167, %v1163
  %v1268 = vpack.c.bf16 %v1168, %v1164
  %v1269 = vpack.c.bf16 %v1169, %v1165
  %v1270 = vpack.c.bf16 %v1170, %v1170
  %v1271 = vpack.c.bf16 %v1171, %v1171
  %v1272 = vpack.c.bf16 %v1172, %v1172
  %v1273 = vpack.c.bf16 %v1173, %v1173
  %v1274 = vld [vmem:[%s2] sm:$0xf]
  %v1275 = vld [vmem:[%s2 + $0x4] sm:$0xf]
  %v1276 = vld [vmem:[%s2 + $0x8] sm:$0xf]
  %v1277 = vld [vmem:[%s2 + $0xc] sm:$0xf]
  %v1278 = vld [vmem:[%s2 + $0x10] sm:$0xf]
  %v1279 = vld [vmem:[%s2 + $0x14] sm:$0xf]
  %v1280 = vld [vmem:[%s2 + $0x18] sm:$0xf]
  %v1281 = vld [vmem:[%s2 + $0x1c] sm:$0xf]
  %v1282 = vld [vmem:[%s2 + $0x20] sm:$0xf]
  %v1283 = vld [vmem:[%s2 + $0x24] sm:$0xf]
  %v1284 = vld [vmem:[%s2 + $0x28] sm:$0xf]
  %v1285 = vld [vmem:[%s2 + $0x2c] sm:$0xf]
  %v1286 = vld [vmem:[%s2 + $0x30] sm:$0xf]
  %v1287 = vld [vmem:[%s2 + $0x34] sm:$0xf]
  %v1288 = vld [vmem:[%s2 + $0x38] sm:$0xf]
  %v1289 = vld [vmem:[%s2 + $0x3c] sm:$0xf]
  %v1290 = vld [vmem:[%s2 + $0x40] sm:$0xf]
  %v1291 = vld [vmem:[%s2 + $0x44] sm:$0xf]
  %v1292 = vld [vmem:[%s2 + $0x48] sm:$0xf]
  %v1293 = vld [vmem:[%s2 + $0x4c] sm:$0xf]
  %v1294 = vld [vmem:[%s2 + $0x50] sm:$0xf]
  %v1295 = vld [vmem:[%s2 + $0x54] sm:$0xf]
  %v1296 = vld [vmem:[%s2 + $0x58] sm:$0xf]
  %v1297 = vld [vmem:[%s2 + $0x5c] sm:$0xf]
  %v1298 = vld [vmem:[%s2 + $0x60] sm:$0xf]
  %v1299 = vld [vmem:[%s2 + $0x64] sm:$0xf]
  %v1300 = vld [vmem:[%s2 + $0x68] sm:$0xf]
  %v1301 = vld [vmem:[%s2 + $0x6c] sm:$0xf]
  %v1302 = vld [vmem:[%s2 + $0x70] sm:$0xf]
  %v1303 = vld [vmem:[%s2 + $0x74] sm:$0xf]
  %v1304 = vld [vmem:[%s2 + $0x78] sm:$0xf]
  %v1305 = vld [vmem:[%s2 + $0x7c] sm:$0xf]
  %v1306 = vld [vmem:[%s2 + $0x80] sm:$0xf]
  %v1307 = vld [vmem:[%s2 + $0x84] sm:$0xf]
  %v1308 = vld [vmem:[%s2 + $0x88] sm:$0xf]
  %v1309 = vld [vmem:[%s2 + $0x8c] sm:$0xf]
  %v1310 = vld [vmem:[%s2 + $0x90] sm:$0xf]
  %v1311 = vld [vmem:[%s2 + $0x94] sm:$0xf]
  %v1312 = vld [vmem:[%s2 + $0x98] sm:$0xf]
  %v1313 = vld [vmem:[%s2 + $0x9c] sm:$0xf]
  %v1314 = vld [vmem:[%s2 + $0xa0] sm:$0xf]
  %v1315 = vld [vmem:[%s2 + $0xa4] sm:$0xf]
  %v1316 = vld [vmem:[%s2 + $0xa8] sm:$0xf]
  %v1317 = vld [vmem:[%s2 + $0xac] sm:$0xf]
  %v1318 = vld [vmem:[%s2 + $0xb0] sm:$0xf]
  %v1319 = vld [vmem:[%s2 + $0xb4] sm:$0xf]
  %v1320 = vld [vmem:[%s2 + $0xb8] sm:$0xf]
  %v1321 = vld [vmem:[%s2 + $0xbc] sm:$0xf]
  %v1322 = vld [vmem:[%s2 + $0xc0] sm:$0xf]
  %v1323 = vld [vmem:[%s2 + $0xc4] sm:$0xf]
  %v1324 = vld [vmem:[%s2 + $0xc8] sm:$0xf]
  %v1325 = vld [vmem:[%s2 + $0xcc] sm:$0xf]
  %v1326 = vld [vmem:[%s2 + $0xd0] sm:$0xf]
  %v1327 = vld [vmem:[%s2 + $0xd4] sm:$0xf]
  %v1328 = vld [vmem:[%s3] sm:$0x1]
  %v1330 = vlaneseq
  %v1331 = vshrl.u32 %v1330, 7
  %v1332 = vsub.s32 0, %v1331
  %v1333 = vrot.slane %v1328, %v1332
  %v1389 = vunpack.c.l.b16 %v1274
  %v1390 = vunpack.c.l.b16 %v1275
  %v1391 = vunpack.c.l.b16 %v1276
  %v1392 = vunpack.c.l.b16 %v1277
  %v1393 = vunpack.c.l.b16 %v1278
  %v1394 = vunpack.c.l.b16 %v1279
  %v1395 = vunpack.c.l.b16 %v1280
  %v1396 = vunpack.c.l.b16 %v1281
  %v1397 = vunpack.c.l.b16 %v1282
  %v1398 = vunpack.c.l.b16 %v1283
  %v1399 = vunpack.c.l.b16 %v1284
  %v1400 = vunpack.c.l.b16 %v1285
  %v1401 = vunpack.c.l.b16 %v1286
  %v1402 = vunpack.c.l.b16 %v1287
  %v1403 = vunpack.c.l.b16 %v1288
  %v1404 = vunpack.c.l.b16 %v1289
  %v1405 = vunpack.c.l.b16 %v1290
  %v1406 = vunpack.c.l.b16 %v1291
  %v1407 = vunpack.c.l.b16 %v1292
  %v1408 = vunpack.c.l.b16 %v1293
  %v1409 = vunpack.c.l.b16 %v1294
  %v1410 = vunpack.c.l.b16 %v1295
  %v1411 = vunpack.c.l.b16 %v1296
  %v1412 = vunpack.c.l.b16 %v1297
  %v1413 = vunpack.c.l.b16 %v1298
  %v1414 = vunpack.c.l.b16 %v1299
  %v1415 = vunpack.c.l.b16 %v1300
  %v1416 = vunpack.c.l.b16 %v1301
  %v1417 = vunpack.c.l.b16 %v1302
  %v1418 = vunpack.c.l.b16 %v1303
  %v1419 = vunpack.c.l.b16 %v1304
  %v1420 = vunpack.c.l.b16 %v1305
  %v1421 = vunpack.c.l.b16 %v1306
  %v1422 = vunpack.c.l.b16 %v1307
  %v1423 = vunpack.c.l.b16 %v1308
  %v1424 = vunpack.c.l.b16 %v1309
  %v1425 = vunpack.c.l.b16 %v1310
  %v1426 = vunpack.c.l.b16 %v1311
  %v1427 = vunpack.c.l.b16 %v1312
  %v1428 = vunpack.c.l.b16 %v1313
  %v1429 = vunpack.c.l.b16 %v1314
  %v1430 = vunpack.c.l.b16 %v1315
  %v1431 = vunpack.c.l.b16 %v1316
  %v1432 = vunpack.c.l.b16 %v1317
  %v1433 = vunpack.c.l.b16 %v1318
  %v1434 = vunpack.c.l.b16 %v1319
  %v1435 = vunpack.c.l.b16 %v1320
  %v1436 = vunpack.c.l.b16 %v1321
  %v1437 = vunpack.c.l.b16 %v1322
  %v1438 = vunpack.c.l.b16 %v1323
  %v1439 = vunpack.c.l.b16 %v1324
  %v1440 = vunpack.c.l.b16 %v1325
  %v1441 = vunpack.c.l.b16 %v1326
  %v1442 = vunpack.c.l.b16 %v1327
  %v1443 = vpack.c.b16 %v1390, %v1389
  %v1444 = vpack.c.b16 %v1392, %v1391
  %v1445 = vpack.c.b16 %v1394, %v1393
  %v1446 = vpack.c.b16 %v1396, %v1395
  %v1447 = vpack.c.b16 %v1398, %v1397
  %v1448 = vpack.c.b16 %v1400, %v1399
  %v1449 = vpack.c.b16 %v1402, %v1401
  %v1450 = vpack.c.b16 %v1404, %v1403
  %v1451 = vpack.c.b16 %v1406, %v1405
  %v1452 = vpack.c.b16 %v1408, %v1407
  %v1453 = vpack.c.b16 %v1410, %v1409
  %v1454 = vpack.c.b16 %v1412, %v1411
  %v1455 = vpack.c.b16 %v1414, %v1413
  %v1456 = vpack.c.b16 %v1416, %v1415
  %v1457 = vpack.c.b16 %v1418, %v1417
  %v1458 = vpack.c.b16 %v1420, %v1419
  %v1459 = vpack.c.b16 %v1422, %v1421
  %v1460 = vpack.c.b16 %v1424, %v1423
  %v1461 = vpack.c.b16 %v1426, %v1425
  %v1462 = vpack.c.b16 %v1428, %v1427
  %v1463 = vpack.c.b16 %v1430, %v1429
  %v1464 = vpack.c.b16 %v1432, %v1431
  %v1465 = vpack.c.b16 %v1434, %v1433
  %v1466 = vpack.c.b16 %v1436, %v1435
  %v1467 = vpack.c.b16 %v1438, %v1437
  %v1468 = vpack.c.b16 %v1440, %v1439
  %v1469 = vpack.c.b16 %v1442, %v1441
  %vm1497 = vcmask 392192
  %v1499 = vsel %vm1497, %v1177, 0
  %v1502 = vsel %vm1497, %v1181, 0
  %v1505 = vsel %vm1497, %v1185, 0
  %v1508 = vsel %vm1497, %v1189, 0
  %v1511 = vsel %vm1497, %v1193, 0
  %v1514 = vsel %vm1497, %v1197, 0
  %v1517 = vsel %vm1497, %v1201, 0
  %v1520 = vsel %vm1497, %v1205, 0
  %v1523 = vsel %vm1497, %v1209, 0
  %v1526 = vsel %vm1497, %v1213, 0
  %v1529 = vsel %vm1497, %v1217, 0
  %v1532 = vsel %vm1497, %v1221, 0
  %v1535 = vsel %vm1497, %v1225, 0
  %v1538 = vsel %vm1497, %v1229, 0
  %v1541 = vsel %vm1497, %v1233, 0
  %v1544 = vsel %vm1497, %v1237, 0
  %v1547 = vsel %vm1497, %v1241, 0
  %v1550 = vsel %vm1497, %v1245, 0
  %v1553 = vsel %vm1497, %v1249, 0
  %v1556 = vsel %vm1497, %v1253, 0
  %v1559 = vsel %vm1497, %v1257, 0
  %v1562 = vsel %vm1497, %v1261, 0
  %v1565 = vsel %vm1497, %v1265, 0
  %v1568 = vsel %vm1497, %v1269, 0
  %v1571 = vsel %vm1497, %v1273, 0
  %1573 = vmatprep.subr.bf16.mxu0 0
  %1574 = vmatpush1.bf16.msra.mxu0 %v1443
  %1575 = vmatprep.subr.bf16.mxu0 0
  %1576 = vmatpush1.bf16.msra.mxu0 %v1444
  %1577 = vmatprep.subr.bf16.mxu0 0
  %1578 = vmatpush1.bf16.msra.mxu0 %v1445
  %1579 = vmatprep.subr.bf16.mxu0 0
  %1580 = vmatpush1.bf16.msra.mxu0 %v1446
  %1581 = vmatprep.subr.bf16.mxu0 0
  %1582 = vmatpush1.bf16.msra.mxu0 %v1447
  %1583 = vmatprep.subr.bf16.mxu0 0
  %1584 = vmatpush1.bf16.msra.mxu0 %v1448
  %1585 = vmatprep.subr.bf16.mxu0 0
  %1586 = vmatpush1.bf16.msra.mxu0 %v1449
  %1587 = vmatprep.subr.bf16.mxu0 0
  %1588 = vmatpush1.bf16.msra.mxu0 %v1450
  %1589 = vmatprep.subr.bf16.mxu0 0
  %1590 = vmatpush1.bf16.msra.mxu0 %v1451
  %1591 = vmatprep.subr.bf16.mxu0 0
  %1592 = vmatpush1.bf16.msra.mxu0 %v1452
  %1593 = vmatprep.subr.bf16.mxu0 0
  %1594 = vmatpush1.bf16.msra.mxu0 %v1453
  %1595 = vmatprep.subr.bf16.mxu0 0
  %1596 = vmatpush1.bf16.msra.mxu0 %v1454
  %1597 = vmatprep.subr.bf16.mxu0 0
  %1598 = vmatpush1.bf16.msra.mxu0 %v1455
  %1599 = vmatprep.subr.bf16.mxu0 0
  %1600 = vmatpush1.bf16.msra.mxu0 %v1456
  %1601 = vmatprep.subr.bf16.mxu0 0
  %1602 = vmatpush1.bf16.msra.mxu0 %v1457
  %1603 = vmatprep.subr.bf16.mxu0 0
  %1604 = vmatpush1.bf16.msra.mxu0 %v1458
  %1605 = vmatprep.mubr.bf16.mxu0 %v1175
  %1606 = vmatmul.mubr.bf16.gmra.mrb[0].mxu0 %v1174
  %v1607 = vpop.f32.mrb[0].mxu0
  %v1608 = vadd.f32 %v1333, %v1607
  %v1609 = vpop.f32.mrb[0].mxu0
  %v1610 = vpop.f32.mrb[0].mxu0
  %v1611 = vadd.f32 %v1333, %v1610
  %v1612 = vpop.f32.mrb[0].mxu0
  %1613 = vmatprep.mubr.bf16.mxu0 %v1179
  %1614 = vmatmul.mubr.bf16.gmra.mrb[0].mxu0 %v1178
  %v1615 = vpop.f32.mrb[0].mxu0
  %v1616 = vadd.f32 %v1333, %v1615
  %v1617 = vpop.f32.mrb[0].mxu0
  %v1618 = vpop.f32.mrb[0].mxu0
  %v1619 = vadd.f32 %v1333, %v1618
  %v1620 = vpop.f32.mrb[0].mxu0
  %1621 = vmatprep.mubr.bf16.mxu0 %v1183
  %1622 = vmatmul.mubr.bf16.gmra.mrb[0].mxu0 %v1182
  %v1623 = vpop.f32.mrb[0].mxu0
  %v1624 = vadd.f32 %v1333, %v1623
  %v1625 = vpop.f32.mrb[0].mxu0
  %v1626 = vpop.f32.mrb[0].mxu0
  %v1627 = vadd.f32 %v1333, %v1626
  %v1628 = vpop.f32.mrb[0].mxu0
  %1629 = vmatprep.mubr.bf16.mxu0 %v1187
  %1630 = vmatmul.mubr.bf16.gmra.mrb[0].mxu0 %v1186
  %v1631 = vpop.f32.mrb[0].mxu0
  %v1632 = vadd.f32 %v1333, %v1631
  %v1633 = vpop.f32.mrb[0].mxu0
  %v1634 = vpop.f32.mrb[0].mxu0
  %v1635 = vadd.f32 %v1333, %v1634
  %v1636 = vpop.f32.mrb[0].mxu0
  %1637 = vmatprep.mubr.bf16.mxu0 %v1191
  %1638 = vmatmul.mubr.bf16.gmra.mrb[0].mxu0 %v1190
  %v1639 = vpop.f32.mrb[0].mxu0
  %v1640 = vadd.f32 %v1333, %v1639
  %v1641 = vpop.f32.mrb[0].mxu0
  %v1642 = vpop.f32.mrb[0].mxu0
  %v1643 = vadd.f32 %v1333, %v1642
  %v1644 = vpop.f32.mrb[0].mxu0
  %1645 = vmatprep.mubr.bf16.mxu0 %v1195
  %1646 = vmatmul.mubr.bf16.gmra.mrb[0].mxu0 %v1194
  %v1647 = vpop.f32.mrb[0].mxu0
  %v1648 = vadd.f32 %v1333, %v1647
  %v1649 = vpop.f32.mrb[0].mxu0
  %v1650 = vpop.f32.mrb[0].mxu0
  %v1651 = vadd.f32 %v1333, %v1650
  %v1652 = vpop.f32.mrb[0].mxu0
  %1653 = vmatprep.mubr.bf16.mxu0 %v1199
  %1654 = vmatmul.mubr.bf16.gmra.mrb[0].mxu0 %v1198
  %v1655 = vpop.f32.mrb[0].mxu0
  %v1656 = vadd.f32 %v1333, %v1655
  %v1657 = vpop.f32.mrb[0].mxu0
  %v1658 = vpop.f32.mrb[0].mxu0
  %v1659 = vadd.f32 %v1333, %v1658
  %v1660 = vpop.f32.mrb[0].mxu0
  %1661 = vmatprep.mubr.bf16.mxu0 %v1203
  %1662 = vmatmul.mubr.bf16.gmra.mrb[0].mxu0 %v1202
  %v1663 = vpop.f32.mrb[0].mxu0
  %v1664 = vadd.f32 %v1333, %v1663
  %v1665 = vpop.f32.mrb[0].mxu0
  %v1666 = vpop.f32.mrb[0].mxu0
  %v1667 = vadd.f32 %v1333, %v1666
  %v1668 = vpop.f32.mrb[0].mxu0
  %1669 = vmatprep.mubr.bf16.mxu0 %v1207
  %1670 = vmatmul.mubr.bf16.gmra.mrb[0].mxu0 %v1206
  %v1671 = vpop.f32.mrb[0].mxu0
  %v1672 = vadd.f32 %v1333, %v1671
  %v1673 = vpop.f32.mrb[0].mxu0
  %v1674 = vpop.f32.mrb[0].mxu0
  %v1675 = vadd.f32 %v1333, %v1674
  %v1676 = vpop.f32.mrb[0].mxu0
  %1677 = vmatprep.mubr.bf16.mxu0 %v1211
  %1678 = vmatmul.mubr.bf16.gmra.mrb[0].mxu0 %v1210
  %v1679 = vpop.f32.mrb[0].mxu0
  %v1680 = vadd.f32 %v1333, %v1679
  %v1681 = vpop.f32.mrb[0].mxu0
  %v1682 = vpop.f32.mrb[0].mxu0
  %v1683 = vadd.f32 %v1333, %v1682
  %v1684 = vpop.f32.mrb[0].mxu0
  %1685 = vmatprep.mubr.bf16.mxu0 %v1215
  %1686 = vmatmul.mubr.bf16.gmra.mrb[0].mxu0 %v1214
  %v1687 = vpop.f32.mrb[0].mxu0
  %v1688 = vadd.f32 %v1333, %v1687
  %v1689 = vpop.f32.mrb[0].mxu0
  %v1690 = vpop.f32.mrb[0].mxu0
  %v1691 = vadd.f32 %v1333, %v1690
  %v1692 = vpop.f32.mrb[0].mxu0
  %1693 = vmatprep.mubr.bf16.mxu0 %v1219
  %1694 = vmatmul.mubr.bf16.gmra.mrb[0].mxu0 %v1218
  %v1695 = vpop.f32.mrb[0].mxu0
  %v1696 = vadd.f32 %v1333, %v1695
  %v1697 = vpop.f32.mrb[0].mxu0
  %v1698 = vpop.f32.mrb[0].mxu0
  %v1699 = vadd.f32 %v1333, %v1698
  %v1700 = vpop.f32.mrb[0].mxu0
  %1701 = vmatprep.mubr.bf16.mxu0 %v1223
  %1702 = vmatmul.mubr.bf16.gmra.mrb[0].mxu0 %v1222
  %v1703 = vpop.f32.mrb[0].mxu0
  %v1704 = vadd.f32 %v1333, %v1703
  %v1705 = vpop.f32.mrb[0].mxu0
  %v1706 = vpop.f32.mrb[0].mxu0
  %v1707 = vadd.f32 %v1333, %v1706
  %v1708 = vpop.f32.mrb[0].mxu0
  %1709 = vmatprep.mubr.bf16.mxu0 %v1227
  %1710 = vmatmul.mubr.bf16.gmra.mrb[0].mxu0 %v1226
  %v1711 = vpop.f32.mrb[0].mxu0
  %v1712 = vadd.f32 %v1333, %v1711
  %v1713 = vpop.f32.mrb[0].mxu0
  %v1714 = vpop.f32.mrb[0].mxu0
  %v1715 = vadd.f32 %v1333, %v1714
  %v1716 = vpop.f32.mrb[0].mxu0
  %1717 = vmatprep.mubr.bf16.mxu0 %v1231
  %1718 = vmatmul.mubr.bf16.gmra.mrb[0].mxu0 %v1230
  %v1719 = vpop.f32.mrb[0].mxu0
  %v1720 = vadd.f32 %v1333, %v1719
  %v1721 = vpop.f32.mrb[0].mxu0
  %v1722 = vpop.f32.mrb[0].mxu0
  %v1723 = vadd.f32 %v1333, %v1722
  %v1724 = vpop.f32.mrb[0].mxu0
  %1725 = vmatprep.mubr.bf16.mxu0 %v1235
  %1726 = vmatmul.mubr.bf16.gmra.mrb[0].mxu0 %v1234
  %v1727 = vpop.f32.mrb[0].mxu0
  %v1728 = vadd.f32 %v1333, %v1727
  %v1729 = vpop.f32.mrb[0].mxu0
  %v1730 = vpop.f32.mrb[0].mxu0
  %v1731 = vadd.f32 %v1333, %v1730
  %v1732 = vpop.f32.mrb[0].mxu0
  %1733 = vmatprep.mubr.bf16.mxu0 %v1239
  %1734 = vmatmul.mubr.bf16.gmra.mrb[0].mxu0 %v1238
  %v1735 = vpop.f32.mrb[0].mxu0
  %v1736 = vadd.f32 %v1333, %v1735
  %v1737 = vpop.f32.mrb[0].mxu0
  %v1738 = vpop.f32.mrb[0].mxu0
  %v1739 = vadd.f32 %v1333, %v1738
  %v1740 = vpop.f32.mrb[0].mxu0
  %1741 = vmatprep.mubr.bf16.mxu0 %v1243
  %1742 = vmatmul.mubr.bf16.gmra.mrb[0].mxu0 %v1242
  %v1743 = vpop.f32.mrb[0].mxu0
  %v1744 = vadd.f32 %v1333, %v1743
  %v1745 = vpop.f32.mrb[0].mxu0
  %v1746 = vpop.f32.mrb[0].mxu0
  %v1747 = vadd.f32 %v1333, %v1746
  %v1748 = vpop.f32.mrb[0].mxu0
  %1749 = vmatprep.mubr.bf16.mxu0 %v1247
  %1750 = vmatmul.mubr.bf16.gmra.mrb[0].mxu0 %v1246
  %v1751 = vpop.f32.mrb[0].mxu0
  %v1752 = vadd.f32 %v1333, %v1751
  %v1753 = vpop.f32.mrb[0].mxu0
  %v1754 = vpop.f32.mrb[0].mxu0
  %v1755 = vadd.f32 %v1333, %v1754
  %v1756 = vpop.f32.mrb[0].mxu0
  %1757 = vmatprep.mubr.bf16.mxu0 %v1251
  %1758 = vmatmul.mubr.bf16.gmra.mrb[0].mxu0 %v1250
  %v1759 = vpop.f32.mrb[0].mxu0
  %v1760 = vadd.f32 %v1333, %v1759
  %v1761 = vpop.f32.mrb[0].mxu0
  %v1762 = vpop.f32.mrb[0].mxu0
  %v1763 = vadd.f32 %v1333, %v1762
  %v1764 = vpop.f32.mrb[0].mxu0
  %1765 = vmatprep.mubr.bf16.mxu0 %v1255
  %1766 = vmatmul.mubr.bf16.gmra.mrb[0].mxu0 %v1254
  %v1767 = vpop.f32.mrb[0].mxu0
  %v1768 = vadd.f32 %v1333, %v1767
  %v1769 = vpop.f32.mrb[0].mxu0
  %v1770 = vpop.f32.mrb[0].mxu0
  %v1771 = vadd.f32 %v1333, %v1770
  %v1772 = vpop.f32.mrb[0].mxu0
  %1773 = vmatprep.mubr.bf16.mxu0 %v1259
  %1774 = vmatmul.mubr.bf16.gmra.mrb[0].mxu0 %v1258
  %v1775 = vpop.f32.mrb[0].mxu0
  %v1776 = vadd.f32 %v1333, %v1775
  %v1777 = vpop.f32.mrb[0].mxu0
  %v1778 = vpop.f32.mrb[0].mxu0
  %v1779 = vadd.f32 %v1333, %v1778
  %v1780 = vpop.f32.mrb[0].mxu0
  %1781 = vmatprep.mubr.bf16.mxu0 %v1263
  %1782 = vmatmul.mubr.bf16.gmra.mrb[0].mxu0 %v1262
  %v1783 = vpop.f32.mrb[0].mxu0
  %v1784 = vadd.f32 %v1333, %v1783
  %v1785 = vpop.f32.mrb[0].mxu0
  %v1786 = vpop.f32.mrb[0].mxu0
  %v1787 = vadd.f32 %v1333, %v1786
  %v1788 = vpop.f32.mrb[0].mxu0
  %1789 = vmatprep.mubr.bf16.mxu0 %v1267
  %1790 = vmatmul.mubr.bf16.gmra.mrb[0].mxu0 %v1266
  %v1791 = vpop.f32.mrb[0].mxu0
  %v1792 = vadd.f32 %v1333, %v1791
  %v1793 = vpop.f32.mrb[0].mxu0
  %v1794 = vpop.f32.mrb[0].mxu0
  %v1795 = vadd.f32 %v1333, %v1794
  %v1796 = vpop.f32.mrb[0].mxu0
  %1797 = vmatprep.mubr.bf16.mxu0 %v1271
  %1798 = vmatmul.mubr.bf16.gmra.mrb[0].mxu0 %v1270
  %v1799 = vpop.f32.mrb[0].mxu0
  %v1800 = vadd.f32 %v1333, %v1799
  %v1801 = vpop.f32.mrb[0].mxu0
  %v1802 = vpop.f32.mrb[0].mxu0
  %v1803 = vpop.f32.mrb[0].mxu0
  %1804 = vdwg.mxu0
  %1805 = vmatprep.subr.bf16.mxu0 0
  %1806 = vmatpush1.bf16.msra.mxu0 %v1459
  %1807 = vmatprep.subr.bf16.mxu0 0
  %1808 = vmatpush1.bf16.msra.mxu0 %v1460
  %1809 = vmatprep.subr.bf16.mxu0 0
  %1810 = vmatpush1.bf16.msra.mxu0 %v1461
  %1811 = vmatprep.subr.bf16.mxu0 0
  %1812 = vmatpush1.bf16.msra.mxu0 %v1462
  %1813 = vmatprep.subr.bf16.mxu0 0
  %1814 = vmatpush1.bf16.msra.mxu0 %v1463
  %1815 = vmatprep.subr.bf16.mxu0 0
  %1816 = vmatpush1.bf16.msra.mxu0 %v1464
  %1817 = vmatprep.subr.bf16.mxu0 0
  %1818 = vmatpush1.bf16.msra.mxu0 %v1465
  %1819 = vmatprep.subr.bf16.mxu0 0
  %1820 = vmatpush1.bf16.msra.mxu0 %v1466
  %1821 = vmatprep.subr.bf16.mxu0 0
  %1822 = vmatpush1.bf16.msra.mxu0 %v1467
  %1823 = vmatprep.subr.bf16.mxu0 0
  %1824 = vmatpush1.bf16.msra.mxu0 %v1468
  %1825 = vmatprep.subr.bf16.mxu0 0
  %1826 = vmatpush1.bf16.msra.mxu0 %v1469
  %1827 = vmatprep.subr.bf16.mxu0 0
  %1828 = vmatpush1.bf16.msra.mxu0 0
  %1829 = vmatprep.subr.bf16.mxu0 0
  %1830 = vmatpush1.bf16.msra.mxu0 0
  %1831 = vmatprep.subr.bf16.mxu0 0
  %1832 = vmatpush1.bf16.msra.mxu0 0
  %1833 = vmatprep.subr.bf16.mxu0 0
  %1834 = vmatpush1.bf16.msra.mxu0 0
  %1835 = vmatprep.subr.bf16.mxu0 0
  %1836 = vmatpush1.bf16.msra.mxu0 0
  %1837 = vmatprep.mubr.bf16.mxu0 %v1499
  %1838 = vmatmul.mubr.bf16.gmra.mrb[0].mxu0 %v1176
  %v1839 = vpop.f32.mrb[0].mxu0
  %v1840 = vadd.f32 %v1608, %v1839
  %v1841 = vpop.f32.mrb[0].mxu0
  %v1842 = vpop.f32.mrb[0].mxu0
  %v1843 = vadd.f32 %v1611, %v1842
  %v1844 = vpop.f32.mrb[0].mxu0
  %1845 = vmatprep.mubr.bf16.mxu0 %v1502
  %1846 = vmatmul.mubr.bf16.gmra.mrb[0].mxu0 %v1180
  %v1847 = vpop.f32.mrb[0].mxu0
  %v1848 = vadd.f32 %v1616, %v1847
  %v1849 = vpop.f32.mrb[0].mxu0
  %v1850 = vpop.f32.mrb[0].mxu0
  %v1851 = vadd.f32 %v1619, %v1850
  %v1852 = vpop.f32.mrb[0].mxu0
  %1853 = vmatprep.mubr.bf16.mxu0 %v1505
  %1854 = vmatmul.mubr.bf16.gmra.mrb[0].mxu0 %v1184
  %v1855 = vpop.f32.mrb[0].mxu0
  %v1856 = vadd.f32 %v1624, %v1855
  %v1857 = vpop.f32.mrb[0].mxu0
  %v1858 = vpop.f32.mrb[0].mxu0
  %v1859 = vadd.f32 %v1627, %v1858
  %v1860 = vpop.f32.mrb[0].mxu0
  %1861 = vmatprep.mubr.bf16.mxu0 %v1508
  %1862 = vmatmul.mubr.bf16.gmra.mrb[0].mxu0 %v1188
  %v1863 = vpop.f32.mrb[0].mxu0
  %v1864 = vadd.f32 %v1632, %v1863
  %v1865 = vpop.f32.mrb[0].mxu0
  %v1866 = vpop.f32.mrb[0].mxu0
  %v1867 = vadd.f32 %v1635, %v1866
  %v1868 = vpop.f32.mrb[0].mxu0
  %1869 = vmatprep.mubr.bf16.mxu0 %v1511
  %1870 = vmatmul.mubr.bf16.gmra.mrb[0].mxu0 %v1192
  %v1871 = vpop.f32.mrb[0].mxu0
  %v1872 = vadd.f32 %v1640, %v1871
  %v1873 = vpop.f32.mrb[0].mxu0
  %v1874 = vpop.f32.mrb[0].mxu0
  %v1875 = vadd.f32 %v1643, %v1874
  %v1876 = vpop.f32.mrb[0].mxu0
  %1877 = vmatprep.mubr.bf16.mxu0 %v1514
  %1878 = vmatmul.mubr.bf16.gmra.mrb[0].mxu0 %v1196
  %v1879 = vpop.f32.mrb[0].mxu0
  %v1880 = vadd.f32 %v1648, %v1879
  %v1881 = vpop.f32.mrb[0].mxu0
  %v1882 = vpop.f32.mrb[0].mxu0
  %v1883 = vadd.f32 %v1651, %v1882
  %v1884 = vpop.f32.mrb[0].mxu0
  %1885 = vmatprep.mubr.bf16.mxu0 %v1517
  %1886 = vmatmul.mubr.bf16.gmra.mrb[0].mxu0 %v1200
  %v1887 = vpop.f32.mrb[0].mxu0
  %v1888 = vadd.f32 %v1656, %v1887
  %v1889 = vpop.f32.mrb[0].mxu0
  %v1890 = vpop.f32.mrb[0].mxu0
  %v1891 = vadd.f32 %v1659, %v1890
  %v1892 = vpop.f32.mrb[0].mxu0
  %1893 = vmatprep.mubr.bf16.mxu0 %v1520
  %1894 = vmatmul.mubr.bf16.gmra.mrb[0].mxu0 %v1204
  %v1895 = vpop.f32.mrb[0].mxu0
  %v1896 = vadd.f32 %v1664, %v1895
  %v1897 = vpop.f32.mrb[0].mxu0
  %v1898 = vpop.f32.mrb[0].mxu0
  %v1899 = vadd.f32 %v1667, %v1898
  %v1900 = vpop.f32.mrb[0].mxu0
  %1901 = vmatprep.mubr.bf16.mxu0 %v1523
  %1902 = vmatmul.mubr.bf16.gmra.mrb[0].mxu0 %v1208
  %v1903 = vpop.f32.mrb[0].mxu0
  %v1904 = vadd.f32 %v1672, %v1903
  %v1905 = vpop.f32.mrb[0].mxu0
  %v1906 = vpop.f32.mrb[0].mxu0
  %v1907 = vadd.f32 %v1675, %v1906
  %v1908 = vpop.f32.mrb[0].mxu0
  %1909 = vmatprep.mubr.bf16.mxu0 %v1526
  %1910 = vmatmul.mubr.bf16.gmra.mrb[0].mxu0 %v1212
  %v1911 = vpop.f32.mrb[0].mxu0
  %v1912 = vadd.f32 %v1680, %v1911
  %v1913 = vpop.f32.mrb[0].mxu0
  %v1914 = vpop.f32.mrb[0].mxu0
  %v1915 = vadd.f32 %v1683, %v1914
  %v1916 = vpop.f32.mrb[0].mxu0
  %1917 = vmatprep.mubr.bf16.mxu0 %v1529
  %1918 = vmatmul.mubr.bf16.gmra.mrb[0].mxu0 %v1216
  %v1919 = vpop.f32.mrb[0].mxu0
  %v1920 = vadd.f32 %v1688, %v1919
  %v1921 = vpop.f32.mrb[0].mxu0
  %v1922 = vpop.f32.mrb[0].mxu0
  %v1923 = vadd.f32 %v1691, %v1922
  %v1924 = vpop.f32.mrb[0].mxu0
  %1925 = vmatprep.mubr.bf16.mxu0 %v1532
  %1926 = vmatmul.mubr.bf16.gmra.mrb[0].mxu0 %v1220
  %v1927 = vpop.f32.mrb[0].mxu0
  %v1928 = vadd.f32 %v1696, %v1927
  %v1929 = vpop.f32.mrb[0].mxu0
  %v1930 = vpop.f32.mrb[0].mxu0
  %v1931 = vadd.f32 %v1699, %v1930
  %v1932 = vpop.f32.mrb[0].mxu0
  %1933 = vmatprep.mubr.bf16.mxu0 %v1535
  %1934 = vmatmul.mubr.bf16.gmra.mrb[0].mxu0 %v1224
  %v1935 = vpop.f32.mrb[0].mxu0
  %v1936 = vadd.f32 %v1704, %v1935
  %v1937 = vpop.f32.mrb[0].mxu0
  %v1938 = vpop.f32.mrb[0].mxu0
  %v1939 = vadd.f32 %v1707, %v1938
  %v1940 = vpop.f32.mrb[0].mxu0
  %1941 = vmatprep.mubr.bf16.mxu0 %v1538
  %1942 = vmatmul.mubr.bf16.gmra.mrb[0].mxu0 %v1228
  %v1943 = vpop.f32.mrb[0].mxu0
  %v1944 = vadd.f32 %v1712, %v1943
  %v1945 = vpop.f32.mrb[0].mxu0
  %v1946 = vpop.f32.mrb[0].mxu0
  %v1947 = vadd.f32 %v1715, %v1946
  %v1948 = vpop.f32.mrb[0].mxu0
  %1949 = vmatprep.mubr.bf16.mxu0 %v1541
  %1950 = vmatmul.mubr.bf16.gmra.mrb[0].mxu0 %v1232
  %v1951 = vpop.f32.mrb[0].mxu0
  %v1952 = vadd.f32 %v1720, %v1951
  %v1953 = vpop.f32.mrb[0].mxu0
  %v1954 = vpop.f32.mrb[0].mxu0
  %v1955 = vadd.f32 %v1723, %v1954
  %v1956 = vpop.f32.mrb[0].mxu0
  %1957 = vmatprep.mubr.bf16.mxu0 %v1544
  %1958 = vmatmul.mubr.bf16.gmra.mrb[0].mxu0 %v1236
  %v1959 = vpop.f32.mrb[0].mxu0
  %v1960 = vadd.f32 %v1728, %v1959
  %v1961 = vpop.f32.mrb[0].mxu0
  %v1962 = vpop.f32.mrb[0].mxu0
  %v1963 = vadd.f32 %v1731, %v1962
  %v1964 = vpop.f32.mrb[0].mxu0
  %1965 = vmatprep.mubr.bf16.mxu0 %v1547
  %1966 = vmatmul.mubr.bf16.gmra.mrb[0].mxu0 %v1240
  %v1967 = vpop.f32.mrb[0].mxu0
  %v1968 = vadd.f32 %v1736, %v1967
  %v1969 = vpop.f32.mrb[0].mxu0
  %v1970 = vpop.f32.mrb[0].mxu0
  %v1971 = vadd.f32 %v1739, %v1970
  %v1972 = vpop.f32.mrb[0].mxu0
  %1973 = vmatprep.mubr.bf16.mxu0 %v1550
  %1974 = vmatmul.mubr.bf16.gmra.mrb[0].mxu0 %v1244
  %v1975 = vpop.f32.mrb[0].mxu0
  %v1976 = vadd.f32 %v1744, %v1975
  %v1977 = vpop.f32.mrb[0].mxu0
  %v1978 = vpop.f32.mrb[0].mxu0
  %v1979 = vadd.f32 %v1747, %v1978
  %v1980 = vpop.f32.mrb[0].mxu0
  %1981 = vmatprep.mubr.bf16.mxu0 %v1553
  %1982 = vmatmul.mubr.bf16.gmra.mrb[0].mxu0 %v1248
  %v1983 = vpop.f32.mrb[0].mxu0
  %v1984 = vadd.f32 %v1752, %v1983
  %v1985 = vpop.f32.mrb[0].mxu0
  %v1986 = vpop.f32.mrb[0].mxu0
  %v1987 = vadd.f32 %v1755, %v1986
  %v1988 = vpop.f32.mrb[0].mxu0
  %1989 = vmatprep.mubr.bf16.mxu0 %v1556
  %1990 = vmatmul.mubr.bf16.gmra.mrb[0].mxu0 %v1252
  %v1991 = vpop.f32.mrb[0].mxu0
  %v1992 = vadd.f32 %v1760, %v1991
  %v1993 = vpop.f32.mrb[0].mxu0
  %v1994 = vpop.f32.mrb[0].mxu0
  %v1995 = vadd.f32 %v1763, %v1994
  %v1996 = vpop.f32.mrb[0].mxu0
  %1997 = vmatprep.mubr.bf16.mxu0 %v1559
  %1998 = vmatmul.mubr.bf16.gmra.mrb[0].mxu0 %v1256
  %v1999 = vpop.f32.mrb[0].mxu0
  %v2000 = vadd.f32 %v1768, %v1999
  %v2001 = vpop.f32.mrb[0].mxu0
  %v2002 = vpop.f32.mrb[0].mxu0
  %v2003 = vadd.f32 %v1771, %v2002
  %v2004 = vpop.f32.mrb[0].mxu0
  %2005 = vmatprep.mubr.bf16.mxu0 %v1562
  %2006 = vmatmul.mubr.bf16.gmra.mrb[0].mxu0 %v1260
  %v2007 = vpop.f32.mrb[0].mxu0
  %v2008 = vadd.f32 %v1776, %v2007
  %v2009 = vpop.f32.mrb[0].mxu0
  %v2010 = vpop.f32.mrb[0].mxu0
  %v2011 = vadd.f32 %v1779, %v2010
  %v2012 = vpop.f32.mrb[0].mxu0
  %2013 = vmatprep.mubr.bf16.mxu0 %v1565
  %2014 = vmatmul.mubr.bf16.gmra.mrb[0].mxu0 %v1264
  %v2015 = vpop.f32.mrb[0].mxu0
  %v2016 = vadd.f32 %v1784, %v2015
  %v2017 = vpop.f32.mrb[0].mxu0
  %v2018 = vpop.f32.mrb[0].mxu0
  %v2019 = vadd.f32 %v1787, %v2018
  %v2020 = vpop.f32.mrb[0].mxu0
  %2021 = vmatprep.mubr.bf16.mxu0 %v1568
  %2022 = vmatmul.mubr.bf16.gmra.mrb[0].mxu0 %v1268
  %v2023 = vpop.f32.mrb[0].mxu0
  %v2024 = vadd.f32 %v1792, %v2023
  %v2025 = vpop.f32.mrb[0].mxu0
  %v2026 = vpop.f32.mrb[0].mxu0
  %v2027 = vadd.f32 %v1795, %v2026
  %v2028 = vpop.f32.mrb[0].mxu0
  %2029 = vmatprep.mubr.bf16.mxu0 %v1571
  %2030 = vmatmul.mubr.bf16.gmra.mrb[0].mxu0 %v1272
  %v2031 = vpop.f32.mrb[0].mxu0
  %v2032 = vadd.f32 %v1800, %v2031
  %v2033 = vpop.f32.mrb[0].mxu0
  %v2034 = vpop.f32.mrb[0].mxu0
  %v2035 = vpop.f32.mrb[0].mxu0
  %2036 = vdwg.mxu0
  %v2037 = vmax.f32 %v1840, 0.0
  %v2038 = vmax.f32 %v1843, 0.0
  %v2039 = vmax.f32 %v1848, 0.0
  %v2040 = vmax.f32 %v1851, 0.0
  %v2041 = vmax.f32 %v1856, 0.0
  %v2042 = vmax.f32 %v1859, 0.0
  %v2043 = vmax.f32 %v1864, 0.0
  %v2044 = vmax.f32 %v1867, 0.0
  %v2045 = vmax.f32 %v1872, 0.0
  %v2046 = vmax.f32 %v1875, 0.0
  %v2047 = vmax.f32 %v1880, 0.0
  %v2048 = vmax.f32 %v1883, 0.0
  %v2049 = vmax.f32 %v1888, 0.0
  %v2050 = vmax.f32 %v1891, 0.0
  %v2051 = vmax.f32 %v1896, 0.0
  %v2052 = vmax.f32 %v1899, 0.0
  %v2053 = vmax.f32 %v1904, 0.0
  %v2054 = vmax.f32 %v1907, 0.0
  %v2055 = vmax.f32 %v1912, 0.0
  %v2056 = vmax.f32 %v1915, 0.0
  %v2057 = vmax.f32 %v1920, 0.0
  %v2058 = vmax.f32 %v1923, 0.0
  %v2059 = vmax.f32 %v1928, 0.0
  %v2060 = vmax.f32 %v1931, 0.0
  %v2061 = vmax.f32 %v1936, 0.0
  %v2062 = vmax.f32 %v1939, 0.0
  %v2063 = vmax.f32 %v1944, 0.0
  %v2064 = vmax.f32 %v1947, 0.0
  %v2065 = vmax.f32 %v1952, 0.0
  %v2066 = vmax.f32 %v1955, 0.0
  %v2067 = vmax.f32 %v1960, 0.0
  %v2068 = vmax.f32 %v1963, 0.0
  %v2069 = vmax.f32 %v1968, 0.0
  %v2070 = vmax.f32 %v1971, 0.0
  %v2071 = vmax.f32 %v1976, 0.0
  %v2072 = vmax.f32 %v1979, 0.0
  %v2073 = vmax.f32 %v1984, 0.0
  %v2074 = vmax.f32 %v1987, 0.0
  %v2075 = vmax.f32 %v1992, 0.0
  %v2076 = vmax.f32 %v1995, 0.0
  %v2077 = vmax.f32 %v2000, 0.0
  %v2078 = vmax.f32 %v2003, 0.0
  %v2079 = vmax.f32 %v2008, 0.0
  %v2080 = vmax.f32 %v2011, 0.0
  %v2081 = vmax.f32 %v2016, 0.0
  %v2082 = vmax.f32 %v2019, 0.0
  %v2083 = vmax.f32 %v2024, 0.0
  %v2084 = vmax.f32 %v2027, 0.0
  %v2085 = vmax.f32 %v2032, 0.0
  %2086 = vst [vmem:[#allocation2] sm:$0xff] %v2037
  %2087 = vst [vmem:[#allocation2 + $0x8] sm:$0xff] %v2038
  %2088 = vst [vmem:[#allocation2 + $0x10] sm:$0xff] %v2039
  %2089 = vst [vmem:[#allocation2 + $0x18] sm:$0xff] %v2040
  %2090 = vst [vmem:[#allocation2 + $0x20] sm:$0xff] %v2041
  %2091 = vst [vmem:[#allocation2 + $0x28] sm:$0xff] %v2042
  %2092 = vst [vmem:[#allocation2 + $0x30] sm:$0xff] %v2043
  %2093 = vst [vmem:[#allocation2 + $0x38] sm:$0xff] %v2044
  %2094 = vst [vmem:[#allocation2 + $0x40] sm:$0xff] %v2045
  %2095 = vst [vmem:[#allocation2 + $0x48] sm:$0xff] %v2046
  %2096 = vst [vmem:[#allocation2 + $0x50] sm:$0xff] %v2047
  %2097 = vst [vmem:[#allocation2 + $0x58] sm:$0xff] %v2048
  %2098 = vst [vmem:[#allocation2 + $0x60] sm:$0xff] %v2049
  %2099 = vst [vmem:[#allocation2 + $0x68] sm:$0xff] %v2050
  %2100 = vst [vmem:[#allocation2 + $0x70] sm:$0xff] %v2051
  %2101 = vst [vmem:[#allocation2 + $0x78] sm:$0xff] %v2052
  %2102 = vst [vmem:[#allocation2 + $0x80] sm:$0xff] %v2053
  %2103 = vst [vmem:[#allocation2 + $0x88] sm:$0xff] %v2054
  %2104 = vst [vmem:[#allocation2 + $0x90] sm:$0xff] %v2055
  %2105 = vst [vmem:[#allocation2 + $0x98] sm:$0xff] %v2056
  %2106 = vst [vmem:[#allocation2 + $0xa0] sm:$0xff] %v2057
  %2107 = vst [vmem:[#allocation2 + $0xa8] sm:$0xff] %v2058
  %2108 = vst [vmem:[#allocation2 + $0xb0] sm:$0xff] %v2059
  %2109 = vst [vmem:[#allocation2 + $0xb8] sm:$0xff] %v2060
  %2110 = vst [vmem:[#allocation2 + $0xc0] sm:$0xff] %v2061
  %2111 = vst [vmem:[#allocation2 + $0xc8] sm:$0xff] %v2062
  %2112 = vst [vmem:[#allocation2 + $0xd0] sm:$0xff] %v2063
  %2113 = vst [vmem:[#allocation2 + $0xd8] sm:$0xff] %v2064
  %2114 = vst [vmem:[#allocation2 + $0xe0] sm:$0xff] %v2065
  %2115 = vst [vmem:[#allocation2 + $0xe8] sm:$0xff] %v2066
  %2116 = vst [vmem:[#allocation2 + $0xf0] sm:$0xff] %v2067
  %2117 = vst [vmem:[#allocation2 + $0xf8] sm:$0xff] %v2068
  %2118 = vst [vmem:[#allocation2 + $0x100] sm:$0xff] %v2069
  %2119 = vst [vmem:[#allocation2 + $0x108] sm:$0xff] %v2070
  %2120 = vst [vmem:[#allocation2 + $0x110] sm:$0xff] %v2071
  %2121 = vst [vmem:[#allocation2 + $0x118] sm:$0xff] %v2072
  %2122 = vst [vmem:[#allocation2 + $0x120] sm:$0xff] %v2073
  %2123 = vst [vmem:[#allocation2 + $0x128] sm:$0xff] %v2074
  %2124 = vst [vmem:[#allocation2 + $0x130] sm:$0xff] %v2075
  %2125 = vst [vmem:[#allocation2 + $0x138] sm:$0xff] %v2076
  %2126 = vst [vmem:[#allocation2 + $0x140] sm:$0xff] %v2077
  %2127 = vst [vmem:[#allocation2 + $0x148] sm:$0xff] %v2078
  %2128 = vst [vmem:[#allocation2 + $0x150] sm:$0xff] %v2079
  %2129 = vst [vmem:[#allocation2 + $0x158] sm:$0xff] %v2080
  %2130 = vst [vmem:[#allocation2 + $0x160] sm:$0xff] %v2081
  %2131 = vst [vmem:[#allocation2 + $0x168] sm:$0xff] %v2082
  %2132 = vst [vmem:[#allocation2 + $0x170] sm:$0xff] %v2083
  %2133 = vst [vmem:[#allocation2 + $0x178] sm:$0xff] %v2084
  %2134 = vst [vmem:[#allocation2 + $0x180] sm:$0xff] %v2085
  loop: start=0, step=1, limit=49
  $region30: #{_moe_forward.1} parent=0 // loop_pre_header
    _
  $region31: #{_moe_forward.1} parent=0 // loop_header
    %s2136 = sphi 0, %s2140
    %p2137 = scmp.ge.s32.totalorder %s2136, 49
    %v2141 = vphi 0.0, %v2253
  $region32: #{_moe_forward.1} parent=0 // loop_header_branch
    %2139 = sbr.rel (%p2137) target = $region36
  $region33: #{_moe_forward.1} parent=0 // loop_body
    %s2142 = smul.u32 %s2136, 8
    %s2143 = scalar_lea.vmem [#allocation2], %s2142
    %v2144 = vld [vmem:[%s2143] sm:$0xff]
    %v2145 = vpack.c.bf16 %v2144, %v2144
    %s2146 = smul.u32 %s2136, 16
    %s2147 = smul.addr %s2146, 4
    %s2148 = scalar_lea.vmem %s4, %s2147
    %v2149 = vld [vmem:[%s2148] sm:$0xf]
    %v2150 = vld [vmem:[%s2148 + $0x4] sm:$0xf]
    %v2151 = vld [vmem:[%s2148 + $0x8] sm:$0xf]
    %v2152 = vld [vmem:[%s2148 + $0xc] sm:$0xf]
    %v2153 = vld [vmem:[%s2148 + $0x10] sm:$0xf]
    %v2154 = vld [vmem:[%s2148 + $0x14] sm:$0xf]
    %v2155 = vld [vmem:[%s2148 + $0x18] sm:$0xf]
    %v2156 = vld [vmem:[%s2148 + $0x1c] sm:$0xf]
    %v2157 = vld [vmem:[%s2148 + $0x20] sm:$0xf]
    %v2158 = vld [vmem:[%s2148 + $0x24] sm:$0xf]
    %v2159 = vld [vmem:[%s2148 + $0x28] sm:$0xf]
    %v2160 = vld [vmem:[%s2148 + $0x2c] sm:$0xf]
    %v2161 = vld [vmem:[%s2148 + $0x30] sm:$0xf]
    %v2162 = vld [vmem:[%s2148 + $0x34] sm:$0xf]
    %v2163 = vld [vmem:[%s2148 + $0x38] sm:$0xf]
    %v2164 = vld [vmem:[%s2148 + $0x3c] sm:$0xf]
    %v2181 = vunpack.c.l.b16 %v2149
    %v2182 = vunpack.c.l.b16 %v2150
    %v2183 = vunpack.c.l.b16 %v2151
    %v2184 = vunpack.c.l.b16 %v2152
    %v2185 = vunpack.c.l.b16 %v2153
    %v2186 = vunpack.c.l.b16 %v2154
    %v2187 = vunpack.c.l.b16 %v2155
    %v2188 = vunpack.c.l.b16 %v2156
    %v2189 = vunpack.c.l.b16 %v2157
    %v2190 = vunpack.c.l.b16 %v2158
    %v2191 = vunpack.c.l.b16 %v2159
    %v2192 = vunpack.c.l.b16 %v2160
    %v2193 = vunpack.c.l.b16 %v2161
    %v2194 = vunpack.c.l.b16 %v2162
    %v2195 = vunpack.c.l.b16 %v2163
    %v2196 = vunpack.c.l.b16 %v2164
    %v2197 = vpack.c.b16 %v2182, %v2181
    %v2198 = vpack.c.b16 %v2184, %v2183
    %v2199 = vpack.c.b16 %v2186, %v2185
    %v2200 = vpack.c.b16 %v2188, %v2187
    %v2201 = vpack.c.b16 %v2190, %v2189
    %v2202 = vpack.c.b16 %v2192, %v2191
    %v2203 = vpack.c.b16 %v2194, %v2193
    %v2204 = vpack.c.b16 %v2196, %v2195
    %2213 = vmatprep.subr.bf16.mxu0 0
    %2214 = vmatpush1.bf16.msra.mxu0 %v2197
    %2215 = vmatprep.subr.bf16.mxu0 0
    %2216 = vmatpush1.bf16.msra.mxu0 %v2198
    %2217 = vmatprep.subr.bf16.mxu0 0
    %2218 = vmatpush1.bf16.msra.mxu0 %v2199
    %2219 = vmatprep.subr.bf16.mxu0 0
    %2220 = vmatpush1.bf16.msra.mxu0 %v2200
    %2221 = vmatprep.subr.bf16.mxu0 0
    %2222 = vmatpush1.bf16.msra.mxu0 %v2201
    %2223 = vmatprep.subr.bf16.mxu0 0
    %2224 = vmatpush1.bf16.msra.mxu0 %v2202
    %2225 = vmatprep.subr.bf16.mxu0 0
    %2226 = vmatpush1.bf16.msra.mxu0 %v2203
    %2227 = vmatprep.subr.bf16.mxu0 0
    %2228 = vmatpush1.bf16.msra.mxu0 %v2204
    %2229 = vmatprep.subr.bf16.mxu0 0
    %2230 = vmatpush1.bf16.msra.mxu0 0
    %2231 = vmatprep.subr.bf16.mxu0 0
    %2232 = vmatpush1.bf16.msra.mxu0 0
    %2233 = vmatprep.subr.bf16.mxu0 0
    %2234 = vmatpush1.bf16.msra.mxu0 0
    %2235 = vmatprep.subr.bf16.mxu0 0
    %2236 = vmatpush1.bf16.msra.mxu0 0
    %2237 = vmatprep.subr.bf16.mxu0 0
    %2238 = vmatpush1.bf16.msra.mxu0 0
    %2239 = vmatprep.subr.bf16.mxu0 0
    %2240 = vmatpush1.bf16.msra.mxu0 0
    %2241 = vmatprep.subr.bf16.mxu0 0
    %2242 = vmatpush1.bf16.msra.mxu0 0
    %2243 = vmatprep.subr.bf16.mxu0 0
    %2244 = vmatpush1.bf16.msra.mxu0 0
    %2245 = vmatprep.mubr.bf16.mxu0 0
    %2246 = vmatmul.mubr.bf16.gmra.mrb[0].mxu0 %v2145
    %v2247 = vpop.f32.mrb[0].mxu0
    %v2248 = vadd.f32 0.0, %v2247
    %v2249 = vpop.f32.mrb[0].mxu0
    %v2250 = vpop.f32.mrb[0].mxu0
    %v2251 = vpop.f32.mrb[0].mxu0
    %2252 = vdwg.mxu0
    %v2253 = vadd.f32 %v2141, %v2248
  $region34: #{_moe_forward.1} parent=0 // loop_footer
    %s2140 = sadd.s32 1, %s2136
  $region35: #{_moe_forward.1} parent=0 // loop_footer_branch
    %2135 = sbr.rel target = $region31
  $region36: #{_moe_forward.1} parent=0 // loop_exit
    _
  %v2254 = vld [vmem:[%s5] sm:$0x1]
  %v2256 = vlaneseq
  %v2257 = vshrl.u32 %v2256, 7
  %v2258 = vsub.s32 0, %v2257
  %v2259 = vrot.slane %v2254, %v2258
  %v2261 = vadd.f32 %v2141, %v2259
  %v2262 = vmax.f32 %v2261, 0.0
  %v2263 = vpack.c.bf16 %v2262, %v2262
  %v2264 = vld [vmem:[%s6] sm:$0xf]
  %v2265 = vld [vmem:[%s6 + $0x4] sm:$0xf]
  %v2266 = vld [vmem:[%s6 + $0x8] sm:$0xf]
  %v2267 = vld [vmem:[%s6 + $0xc] sm:$0xf]
  %v2268 = vld [vmem:[%s6 + $0x10] sm:$0xf]
  %v2269 = vld [vmem:[%s6 + $0x14] sm:$0xf]
  %v2270 = vld [vmem:[%s6 + $0x18] sm:$0xf]
  %v2271 = vld [vmem:[%s6 + $0x1c] sm:$0xf]
  %v2272 = vld [vmem:[%s6 + $0x20] sm:$0xf]
  %v2273 = vld [vmem:[%s6 + $0x24] sm:$0xf]
  %v2274 = vld [vmem:[%s6 + $0x28] sm:$0xf]
  %v2275 = vld [vmem:[%s6 + $0x2c] sm:$0xf]
  %v2276 = vld [vmem:[%s6 + $0x30] sm:$0xf]
  %v2277 = vld [vmem:[%s6 + $0x34] sm:$0xf]
  %v2278 = vld [vmem:[%s6 + $0x38] sm:$0xf]
  %v2279 = vld [vmem:[%s6 + $0x3c] sm:$0xf]
  %v2296 = vunpack.c.l.b16 %v2264
  %v2297 = vunpack.c.l.b16 %v2265
  %v2298 = vunpack.c.l.b16 %v2266
  %v2299 = vunpack.c.l.b16 %v2267
  %v2300 = vunpack.c.l.b16 %v2268
  %v2301 = vunpack.c.l.b16 %v2269
  %v2302 = vunpack.c.l.b16 %v2270
  %v2303 = vunpack.c.l.b16 %v2271
  %v2304 = vunpack.c.l.b16 %v2272
  %v2305 = vunpack.c.l.b16 %v2273
  %v2306 = vunpack.c.l.b16 %v2274
  %v2307 = vunpack.c.l.b16 %v2275
  %v2308 = vunpack.c.l.b16 %v2276
  %v2309 = vunpack.c.l.b16 %v2277
  %v2310 = vunpack.c.l.b16 %v2278
  %v2311 = vunpack.c.l.b16 %v2279
  %v2312 = vpack.c.b16 %v2297, %v2296
  %v2313 = vpack.c.b16 %v2299, %v2298
  %v2314 = vpack.c.b16 %v2301, %v2300
  %v2315 = vpack.c.b16 %v2303, %v2302
  %v2316 = vpack.c.b16 %v2305, %v2304
  %v2317 = vpack.c.b16 %v2307, %v2306
  %v2318 = vpack.c.b16 %v2309, %v2308
  %v2319 = vpack.c.b16 %v2311, %v2310
  %2328 = vmatprep.subr.bf16.mxu0 0
  %2329 = vmatpush1.bf16.msra.mxu0 %v2312
  %2330 = vmatprep.subr.bf16.mxu0 0
  %2331 = vmatpush1.bf16.msra.mxu0 %v2313
  %2332 = vmatprep.subr.bf16.mxu0 0
  %2333 = vmatpush1.bf16.msra.mxu0 %v2314
  %2334 = vmatprep.subr.bf16.mxu0 0
  %2335 = vmatpush1.bf16.msra.mxu0 %v2315
  %2336 = vmatprep.subr.bf16.mxu0 0
  %2337 = vmatpush1.bf16.msra.mxu0 %v2316
  %2338 = vmatprep.subr.bf16.mxu0 0
  %2339 = vmatpush1.bf16.msra.mxu0 %v2317
  %2340 = vmatprep.subr.bf16.mxu0 0
  %2341 = vmatpush1.bf16.msra.mxu0 %v2318
  %2342 = vmatprep.subr.bf16.mxu0 0
  %2343 = vmatpush1.bf16.msra.mxu0 %v2319
  %2344 = vmatprep.subr.bf16.mxu0 0
  %2345 = vmatpush1.bf16.msra.mxu0 0
  %2346 = vmatprep.subr.bf16.mxu0 0
  %2347 = vmatpush1.bf16.msra.mxu0 0
  %2348 = vmatprep.subr.bf16.mxu0 0
  %2349 = vmatpush1.bf16.msra.mxu0 0
  %2350 = vmatprep.subr.bf16.mxu0 0
  %2351 = vmatpush1.bf16.msra.mxu0 0
  %2352 = vmatprep.subr.bf16.mxu0 0
  %2353 = vmatpush1.bf16.msra.mxu0 0
  %2354 = vmatprep.subr.bf16.mxu0 0
  %2355 = vmatpush1.bf16.msra.mxu0 0
  %2356 = vmatprep.subr.bf16.mxu0 0
  %2357 = vmatpush1.bf16.msra.mxu0 0
  %2358 = vmatprep.subr.bf16.mxu0 0
  %2359 = vmatpush1.bf16.msra.mxu0 0
  %2360 = vmatprep.mubr.bf16.mxu0 0
  %2361 = vmatmul.mubr.bf16.gmra.mrb[0].mxu0 %v2263
  %v2362 = vpop.f32.mrb[0].mxu0
  %v2363 = vadd.f32 0.0, %v2362
  %v2364 = vpop.f32.mrb[0].mxu0
  %v2365 = vpop.f32.mrb[0].mxu0
  %v2366 = vpop.f32.mrb[0].mxu0
  %2367 = vdwg.mxu0
  %2368 = vst [vmem:[%s7] sm:$0xff] %v2363
  // Predicated region
  $region37: #{_moe_forward.1} parent=0 // pred_check
    _
  $region38: #{_moe_forward.1} parent=0 // pred_check_branch
    %2370 = sbr.rel (0) target = $region40
  $region39: #{_moe_forward.1} parent=0 // pred_region
    _
  $region40: #{_moe_forward.1} parent=0 // pred_fallthru
    _
  // Predicated region
  $region41: #{_moe_forward.1} parent=0 // pred_check
    _
  $region42: #{_moe_forward.1} parent=0 // pred_check_branch
    %2372 = sbr.rel (0) target = $region44
  $region43: #{_moe_forward.1} parent=0 // pred_region
    _
  $region44: #{_moe_forward.1} parent=0 // pred_fallthru
    _

</llo_original>
